<compile_context>
chip_gen: v7x
topology: tpu7x:2x2x1
jax: 0.10.0
libtpu: 0.0.40
codegen_flags: <defaults>
</compile_context>

<pallas_src>
import warnings

import jax
import jax.numpy as jnp
from jax.experimental import pallas as pl
from jax.experimental.pallas import tpu as pltpu

_LANE = 128
_LANE_SHIFT = 7            # log2(_LANE)

_TAKE_SUPPORTED = None     # resolved once by _take_path_supported()


def _round_up(x, m):
    return (x + m - 1) // m * m


# --------------------------------------------------------------------------- kernels


def _for_each_batch(bblk, fn):
    """Apply fn(b) for b in [0, bblk): static unroll when small, fori_loop otherwise."""
    if bblk <= 8:
        for b in range(bblk):              # static unroll, LLO-visible
            fn(b)
    else:
        def body(b, carry):                # dynamic ref[b] indexing, bounded code size
            fn(b)
            return carry
        jax.lax.fori_loop(0, bblk, body, 0, unroll=(bblk <= 16))


def _take_kernel(an_ref, nbr_ref, out_ref):
    """Fast path: per-batch lane gather over 128-wide table chunks.

    an_ref  : (bblk, 1, Np)     lane-major per-batch lookup table, Np = k * 128
    nbr_ref : (bblk, rblk, 128) int32 flattened neighbor indices
    out_ref : (bblk, rblk, 128) gathered values
    """
    bblk, rblk, lane = nbr_ref.shape
    np_ = an_ref.shape[2]
    n_chunks = np_ // lane

    def gather_one(b):
        nbr = nbr_ref[b]                           # (rblk, 128)
        lane_id = nbr & (lane - 1)                 # in-chunk lane index (hoisted)
        if n_chunks == 1:
            tbl = jnp.broadcast_to(an_ref[b, :, :], (rblk, lane))
            out_ref[b] = jnp.take_along_axis(
                tbl, lane_id, axis=1, mode="promise_in_bounds")
        else:
            chunk_id = nbr >> _LANE_SHIFT          # which 128-wide chunk (hoisted)
            acc = jnp.zeros((rblk, lane), out_ref.dtype)
            for c in range(n_chunks):              # static: Np / 128 chunks
                row = an_ref[b, :, c * lane:(c + 1) * lane]     # (1, 128)
                tbl = jnp.broadcast_to(row, (rblk, lane))
                g = jnp.take_along_axis(
                    tbl, lane_id, axis=1, mode="promise_in_bounds")
                acc = jnp.where(chunk_id == c, g, acc)
            out_ref[b] = acc

    _for_each_batch(bblk, gather_one)


def _select_kernel(an_ref, nbr_ref, out_ref):
    """Fallback gather (O(Nat) compare-select chain); used only if the take path
    does not lower on this backend.  No (K, rblk, 128) temporaries, no per-chunk iota.

    an_ref  : (bblk, Np, 1)     column-layout per-batch lookup table (zero padded)
    nbr_ref : (bblk, rblk, 128) int32 flattened neighbor indices
    out_ref : (bblk, rblk, 128)
    """
    bblk, rblk, lane = nbr_ref.shape
    np_ = an_ref.shape[1]

    def gather_one(b):
        nbr = nbr_ref[b]                           # (rblk, 128)
        acc = jnp.zeros((rblk, lane), out_ref.dtype)
        for e in range(np_):                       # static unroll (fallback only)
            val = an_ref[b, pl.ds(e, 1), :]        # (1, 1), broadcast by where
            acc = jnp.where(nbr == e, val, acc)
        out_ref[b] = acc

    _for_each_batch(bblk, gather_one)


# --------------------------------------------------------------------- call builders


def _build_gather_call(kernel, table_shape, nbr_shape, val_dtype, bblk, rblk, vmem_limit):
    batch, rows, lane = nbr_shape
    grid = (pl.cdiv(batch, bblk), pl.cdiv(rows, rblk))
    table_block = (bblk,) + tuple(table_shape[1:])

    def call(table, nbr3):
        return pl.pallas_call(
            kernel,
            out_shape=jax.ShapeDtypeStruct((batch, rows, lane), val_dtype),
            grid_spec=pltpu.PrefetchScalarGridSpec(
                num_scalar_prefetch=0,
                grid=grid,
                in_specs=[
                    # Table block: constant along the row axis -> stays resident.
                    pl.BlockSpec(table_block, lambda i, j: (i, 0, 0)),
                    pl.BlockSpec((bblk, rblk, lane), lambda i, j: (i, j, 0)),
                ],
                out_specs=pl.BlockSpec((bblk, rblk, lane), lambda i, j: (i, j, 0)),
            ),
            compiler_params=pltpu.CompilerParams(
                dimension_semantics=("parallel", "parallel"),
                vmem_limit_bytes=vmem_limit,
            ),
        )(table, nbr3)

    return call


def _vmem_budget():
    """(vmem_limit_bytes, per-step neighbor-block budget), generation aware."""
    cap = 128 * 1024 * 1024
    try:
        info = pltpu.get_tpu_info()
        cap = int(getattr(info, "vmem_capacity_bytes", cap) or cap)
    except Exception:
        pass
    if cap <= 64 * 1024 * 1024:
        # v7x-class: 64 MiB physical VMEM shared by 2 TensorCores.
        return 32 * 1024 * 1024, 2 * 1024 * 1024
    # v5e / v6e: 128 MiB physical; raise the scoped limit past the 16/32 MiB defaults.
    return 64 * 1024 * 1024, 4 * 1024 * 1024


def _pick_blocks(batch, rows, bblk_cap, block_budget_bytes):
    """Pick (bblk, rblk): grow along rows first, then batches, within the budget."""
    row_bytes = _LANE * 4                          # one 128-lane int32/float32 row
    budget_rows = max(8, block_budget_bytes // row_bytes)
    if rows <= budget_rows:
        rblk = rows                                # full row extent (OK even if % 8 != 0)
        bblk = max(1, min(batch, bblk_cap,
                          block_budget_bytes // max(1, rows * row_bytes)))
    else:
        rblk = (budget_rows // 8) * 8              # sublane-aligned row block
        bblk = 1
    # Ensure >= 2 grid steps when the data allows it: v7x has 2 TensorCores, and a
    # single-step grid also gets no input/output pipelining.
    if pl.cdiv(batch, bblk) * pl.cdiv(rows, rblk) < 2:
        if batch > 1 and bblk > 1:
            bblk = max(1, bblk // 2)
        elif rows >= 16 and rblk >= 16:
            rblk = max(8, (rblk // 2) // 8 * 8)
    return bblk, rblk


def _take_path_supported():
    """One-time, eager capability probe for the in-kernel dynamic lane gather.

    Compiles a tiny probe pallas_call on concrete inputs (outside any user jit trace,
    never branching on traced values).  On failure we warn and use the fallback kernel.
    """
    global _TAKE_SUPPORTED
    if _TAKE_SUPPORTED is None:
        try:
            tbl = jnp.zeros((1, 1, 2 * _LANE), jnp.int32)   # 2 chunks: exercises the
            nbr = jnp.zeros((1, 8, _LANE), jnp.int32)       # multi-chunk select path too
            probe = _build_gather_call(_take_kernel, tbl.shape, nbr.shape, jnp.int32,
                                       bblk=1, rblk=8, vmem_limit=32 * 1024 * 1024)
            jax.jit(probe).lower(tbl, nbr).compile()
            _TAKE_SUPPORTED = True
        except Exception as e:  # pragma: no cover - backend-dependent
            warnings.warn(
                "neighbor_elements: in-kernel dynamic gather did not lower "
                f"({type(e).__name__}); using the slower compare-select fallback.")
            _TAKE_SUPPORTED = False
    return _TAKE_SUPPORTED


# --------------------------------------------------------------------------- wrapper


def neighbor_elements(atomic_numbers, neighbors):
    """Pallas TPU implementation of schnetpack's NeighborElements forward.

    atomic_numbers : (B, Nat, 1)           atom-wise property (int or float)
    neighbors      : (B, Nat, Nneigh) int  indices into the Nat axis
    returns        : (B, Nat, Nneigh, 1)   matches torch advanced indexing
    """
    an = jnp.asarray(atomic_numbers)
    nbr = jnp.asarray(neighbors)
    if an.ndim != 3 or an.shape[-1] != 1 or nbr.ndim != 3:
        raise ValueError("expected atomic_numbers (B,Nat,1) and neighbors (B,Nat,Nneigh)")
    batch, nat, _ = an.shape
    nneigh = nbr.shape[2]
    orig_dtype = an.dtype

    # Explicit 32-bit canonicalization (int64/float64 inputs are demoted deliberately).
    val_dtype = jnp.float32 if jnp.issubdtype(orig_dtype, jnp.floating) else jnp.int32

    # Tiny per-batch lookup table, lane-padded to a multiple of 128 (O(B*Nat) elems,
    # ~Nneigh-times smaller than the neighbor tensor -> negligible extra HBM traffic).
    np_pad = _round_up(nat, _LANE)
    an2 = an.reshape(batch, nat).astype(val_dtype)
    an_pad = an2 if np_pad == nat else jnp.pad(an2, ((0, 0), (0, np_pad - nat)))

    flat = nat * nneigh
    idx2 = nbr.reshape(batch, flat).astype(jnp.int32)

    if flat % _LANE == 0:
        # Fast path (common case): the (B, Nat*Nneigh) <-> (B, R, 128) reshapes are
        # free; no extra HBM passes over the large neighbor / output tensors.
        rows = flat // _LANE
        nbr3 = idx2.reshape(batch, rows, _LANE)
        padded = False
    else:
        # TODO(synk): ragged tail is still padded/depadded in XLA (one extra pass over
        # neighbors + output); only taken when Nat*Nneigh % 128 != 0.
        flat_pad = _round_up(flat, _LANE)
        rows = flat_pad // _LANE
        nbr3 = jnp.pad(idx2, ((0, 0), (0, flat_pad - flat))).reshape(batch, rows, _LANE)
        padded = True

    # TODO(synk): out-of-range / negative neighbor indices produce unspecified (but
    # in-bounds, non-faulting) values; torch wraps negatives and errors on idx >= Nat.
    # All in-range indices match exactly.

    vmem_limit, block_budget = _vmem_budget()
    use_take = _take_path_supported()
    bblk_cap = 64 if use_take else 8
    bblk, rblk = _pick_blocks(batch, rows, bblk_cap, block_budget)

    if use_take:
        kernel, table = _take_kernel, an_pad.reshape(batch, 1, np_pad)
    else:
        kernel, table = _select_kernel, an_pad.reshape(batch, np_pad, 1)

    call = _build_gather_call(kernel, table.shape, nbr3.shape, val_dtype,
                              bblk, rblk, vmem_limit)
    out3 = call(table, nbr3)

    out = out3.reshape(batch, rows * _LANE)
    if padded:
        out = out[:, :flat]
    return out.reshape(batch, nat, nneigh, 1).astype(orig_dtype)


# ------------------------------------------------------------------------------ main


if __name__ == "__main__":
    key = jax.random.PRNGKey(0)
    k1, k2, k3, k4 = jax.random.split(key, 4)

    # Test 1: tiny shape, single 128-wide table chunk, ragged tail (flat % 128 != 0).
    B, NAT, NNEIGH = 2, 8, 8
    atomic_numbers = jax.random.randint(k1, (B, NAT, 1), 1, 11, dtype=jnp.int32)
    neighbors = jax.random.randint(k2, (B, NAT, NNEIGH), 0, NAT, dtype=jnp.int32)

    out = jax.block_until_ready(neighbor_elements(atomic_numbers, neighbors))
    expected = atomic_numbers[jnp.arange(B)[:, None, None], neighbors]
    assert out.shape == expected.shape, (out.shape, expected.shape)
    assert out.dtype == atomic_numbers.dtype
    assert bool(jnp.all(out == expected))

    # Test 2: Nat > 128 (multi-chunk table), flat % 128 == 0 (zero-copy fast path).
    B2, NAT2, NNEIGH2 = 3, 160, 20
    atomic_numbers2 = jax.random.randint(k3, (B2, NAT2, 1), 1, 95, dtype=jnp.int32)
    neighbors2 = jax.random.randint(k4, (B2, NAT2, NNEIGH2), 0, NAT2, dtype=jnp.int32)

    out2 = jax.block_until_ready(neighbor_elements(atomic_numbers2, neighbors2))
    expected2 = atomic_numbers2[jnp.arange(B2)[:, None, None], neighbors2]
    assert out2.shape == expected2.shape, (out2.shape, expected2.shape)
    assert bool(jnp.all(out2 == expected2))

    print("KERNEL_OK")
</pallas_src>

<mosaic_0001>
module attributes {stable_mosaic.version = 11 : i64} {
  func.func @_select_kernel(%arg0: i32, %arg1: i32, %arg2: memref<1x128x1xi32, #tpu.memory_space<vmem>>, %arg3: memref<1x1x128xi32, #tpu.memory_space<vmem>>, %arg4: memref<1x1x128xi32, #tpu.memory_space<vmem>>) attributes {dimension_semantics = [#tpu.dimension_semantics<parallel>, #tpu.dimension_semantics<parallel>], iteration_bounds = array<i64: 2, 1>, scalar_prefetch = 0 : i64, scratch_operands = 0 : i64, tpu.core_type = #tpu.core_type<tc>, window_params = [{transform_indices = @transform_0, window_bounds = array<i64: 1, 128, 1>}, {transform_indices = @transform_1, window_bounds = array<i64: 1, 1, 128>}, {transform_indices = @transform_2, window_bounds = array<i64: 1, 1, 128>}]} {
    %c0 = arith.constant 0 : index
    %c0_0 = arith.constant 0 : index
    %c0_1 = arith.constant 0 : index
    %0 = vector.load %arg3[%c0, %c0_0, %c0_1] : memref<1x1x128xi32, #tpu.memory_space<vmem>>, vector<1x1x128xi32>
    %1 = vector.shape_cast %0 : vector<1x1x128xi32> to vector<1x128xi32>
    %c0_i32 = arith.constant 0 : i32
    %2 = vector.broadcast %c0_i32 : i32 to vector<1x128xi32>
    %c0_2 = arith.constant 0 : index
    %c0_3 = arith.constant 0 : index
    %c0_4 = arith.constant 0 : index
    %3 = vector.load %arg2[%c0_2, %c0_3, %c0_4] : memref<1x128x1xi32, #tpu.memory_space<vmem>>, vector<1x1x1xi32>
    %4 = vector.shape_cast %3 : vector<1x1x1xi32> to vector<1x1xi32>
    %c0_i32_5 = arith.constant 0 : i32
    %5 = vector.broadcast %c0_i32_5 : i32 to vector<1x128xi32>
    %6 = arith.cmpi eq, %1, %5 : vector<1x128xi32>
    %7 = vector.shape_cast %4 : vector<1x1xi32> to vector<1x1xi32>
    %8 = vector.broadcast %7 : vector<1x1xi32> to vector<1x128xi32>
    %9 = arith.select %6, %8, %2 : vector<1x128xi1>, vector<1x128xi32>
    %c0_6 = arith.constant 0 : index
    %c1 = arith.constant 1 : index
    %c0_7 = arith.constant 0 : index
    %10 = vector.load %arg2[%c0_6, %c1, %c0_7] : memref<1x128x1xi32, #tpu.memory_space<vmem>>, vector<1x1x1xi32>
    %11 = vector.shape_cast %10 : vector<1x1x1xi32> to vector<1x1xi32>
    %c1_i32 = arith.constant 1 : i32
    %12 = vector.broadcast %c1_i32 : i32 to vector<1x128xi32>
    %13 = arith.cmpi eq, %1, %12 : vector<1x128xi32>
    %14 = vector.shape_cast %11 : vector<1x1xi32> to vector<1x1xi32>
    %15 = vector.broadcast %14 : vector<1x1xi32> to vector<1x128xi32>
    %16 = arith.select %13, %15, %9 : vector<1x128xi1>, vector<1x128xi32>
    %c0_8 = arith.constant 0 : index
    %c2 = arith.constant 2 : index
    %c0_9 = arith.constant 0 : index
    %17 = vector.load %arg2[%c0_8, %c2, %c0_9] : memref<1x128x1xi32, #tpu.memory_space<vmem>>, vector<1x1x1xi32>
    %18 = vector.shape_cast %17 : vector<1x1x1xi32> to vector<1x1xi32>
    %c2_i32 = arith.constant 2 : i32
    %19 = vector.broadcast %c2_i32 : i32 to vector<1x128xi32>
    %20 = arith.cmpi eq, %1, %19 : vector<1x128xi32>
    %21 = vector.shape_cast %18 : vector<1x1xi32> to vector<1x1xi32>
    %22 = vector.broadcast %21 : vector<1x1xi32> to vector<1x128xi32>
    %23 = arith.select %20, %22, %16 : vector<1x128xi1>, vector<1x128xi32>
    %c0_10 = arith.constant 0 : index
    %c3 = arith.constant 3 : index
    %c0_11 = arith.constant 0 : index
    %24 = vector.load %arg2[%c0_10, %c3, %c0_11] : memref<1x128x1xi32, #tpu.memory_space<vmem>>, vector<1x1x1xi32>
    %25 = vector.shape_cast %24 : vector<1x1x1xi32> to vector<1x1xi32>
    %c3_i32 = arith.constant 3 : i32
    %26 = vector.broadcast %c3_i32 : i32 to vector<1x128xi32>
    %27 = arith.cmpi eq, %1, %26 : vector<1x128xi32>
    %28 = vector.shape_cast %25 : vector<1x1xi32> to vector<1x1xi32>
    %29 = vector.broadcast %28 : vector<1x1xi32> to vector<1x128xi32>
    %30 = arith.select %27, %29, %23 : vector<1x128xi1>, vector<1x128xi32>
    %c0_12 = arith.constant 0 : index
    %c4 = arith.constant 4 : index
    %c0_13 = arith.constant 0 : index
    %31 = vector.load %arg2[%c0_12, %c4, %c0_13] : memref<1x128x1xi32, #tpu.memory_space<vmem>>, vector<1x1x1xi32>
    %32 = vector.shape_cast %31 : vector<1x1x1xi32> to vector<1x1xi32>
    %c4_i32 = arith.constant 4 : i32
    %33 = vector.broadcast %c4_i32 : i32 to vector<1x128xi32>
    %34 = arith.cmpi eq, %1, %33 : vector<1x128xi32>
    %35 = vector.shape_cast %32 : vector<1x1xi32> to vector<1x1xi32>
    %36 = vector.broadcast %35 : vector<1x1xi32> to vector<1x128xi32>
    %37 = arith.select %34, %36, %30 : vector<1x128xi1>, vector<1x128xi32>
    %c0_14 = arith.constant 0 : index
    %c5 = arith.constant 5 : index
    %c0_15 = arith.constant 0 : index
    %38 = vector.load %arg2[%c0_14, %c5, %c0_15] : memref<1x128x1xi32, #tpu.memory_space<vmem>>, vector<1x1x1xi32>
    %39 = vector.shape_cast %38 : vector<1x1x1xi32> to vector<1x1xi32>
    %c5_i32 = arith.constant 5 : i32
    %40 = vector.broadcast %c5_i32 : i32 to vector<1x128xi32>
    %41 = arith.cmpi eq, %1, %40 : vector<1x128xi32>
    %42 = vector.shape_cast %39 : vector<1x1xi32> to vector<1x1xi32>
    %43 = vector.broadcast %42 : vector<1x1xi32> to vector<1x128xi32>
    %44 = arith.select %41, %43, %37 : vector<1x128xi1>, vector<1x128xi32>
    %c0_16 = arith.constant 0 : index
    %c6 = arith.constant 6 : index
    %c0_17 = arith.constant 0 : index
    %45 = vector.load %arg2[%c0_16, %c6, %c0_17] : memref<1x128x1xi32, #tpu.memory_space<vmem>>, vector<1x1x1xi32>
    %46 = vector.shape_cast %45 : vector<1x1x1xi32> to vector<1x1xi32>
    %c6_i32 = arith.constant 6 : i32
    %47 = vector.broadcast %c6_i32 : i32 to vector<1x128xi32>
    %48 = arith.cmpi eq, %1, %47 : vector<1x128xi32>
    %49 = vector.shape_cast %46 : vector<1x1xi32> to vector<1x1xi32>
    %50 = vector.broadcast %49 : vector<1x1xi32> to vector<1x128xi32>
    %51 = arith.select %48, %50, %44 : vector<1x128xi1>, vector<1x128xi32>
    %c0_18 = arith.constant 0 : index
    %c7 = arith.constant 7 : index
    %c0_19 = arith.constant 0 : index
    %52 = vector.load %arg2[%c0_18, %c7, %c0_19] : memref<1x128x1xi32, #tpu.memory_space<vmem>>, vector<1x1x1xi32>
    %53 = vector.shape_cast %52 : vector<1x1x1xi32> to vector<1x1xi32>
    %c7_i32 = arith.constant 7 : i32
    %54 = vector.broadcast %c7_i32 : i32 to vector<1x128xi32>
    %55 = arith.cmpi eq, %1, %54 : vector<1x128xi32>
    %56 = vector.shape_cast %53 : vector<1x1xi32> to vector<1x1xi32>
    %57 = vector.broadcast %56 : vector<1x1xi32> to vector<1x128xi32>
    %58 = arith.select %55, %57, %51 : vector<1x128xi1>, vector<1x128xi32>
    %c0_20 = arith.constant 0 : index
    %c8 = arith.constant 8 : index
    %c0_21 = arith.constant 0 : index
    %59 = vector.load %arg2[%c0_20, %c8, %c0_21] : memref<1x128x1xi32, #tpu.memory_space<vmem>>, vector<1x1x1xi32>
    %60 = vector.shape_cast %59 : vector<1x1x1xi32> to vector<1x1xi32>
    %c8_i32 = arith.constant 8 : i32
    %61 = vector.broadcast %c8_i32 : i32 to vector<1x128xi32>
    %62 = arith.cmpi eq, %1, %61 : vector<1x128xi32>
    %63 = vector.shape_cast %60 : vector<1x1xi32> to vector<1x1xi32>
    %64 = vector.broadcast %63 : vector<1x1xi32> to vector<1x128xi32>
    %65 = arith.select %62, %64, %58 : vector<1x128xi1>, vector<1x128xi32>
    %c0_22 = arith.constant 0 : index
    %c9 = arith.constant 9 : index
    %c0_23 = arith.constant 0 : index
    %66 = vector.load %arg2[%c0_22, %c9, %c0_23] : memref<1x128x1xi32, #tpu.memory_space<vmem>>, vector<1x1x1xi32>
    %67 = vector.shape_cast %66 : vector<1x1x1xi32> to vector<1x1xi32>
    %c9_i32 = arith.constant 9 : i32
    %68 = vector.broadcast %c9_i32 : i32 to vector<1x128xi32>
    %69 = arith.cmpi eq, %1, %68 : vector<1x128xi32>
    %70 = vector.shape_cast %67 : vector<1x1xi32> to vector<1x1xi32>
    %71 = vector.broadcast %70 : vector<1x1xi32> to vector<1x128xi32>
    %72 = arith.select %69, %71, %65 : vector<1x128xi1>, vector<1x128xi32>
    %c0_24 = arith.constant 0 : index
    %c10 = arith.constant 10 : index
    %c0_25 = arith.constant 0 : index
    %73 = vector.load %arg2[%c0_24, %c10, %c0_25] : memref<1x128x1xi32, #tpu.memory_space<vmem>>, vector<1x1x1xi32>
    %74 = vector.shape_cast %73 : vector<1x1x1xi32> to vector<1x1xi32>
    %c10_i32 = arith.constant 10 : i32
    %75 = vector.broadcast %c10_i32 : i32 to vector<1x128xi32>
    %76 = arith.cmpi eq, %1, %75 : vector<1x128xi32>
    %77 = vector.shape_cast %74 : vector<1x1xi32> to vector<1x1xi32>
    %78 = vector.broadcast %77 : vector<1x1xi32> to vector<1x128xi32>
    %79 = arith.select %76, %78, %72 : vector<1x128xi1>, vector<1x128xi32>
    %c0_26 = arith.constant 0 : index
    %c11 = arith.constant 11 : index
    %c0_27 = arith.constant 0 : index
    %80 = vector.load %arg2[%c0_26, %c11, %c0_27] : memref<1x128x1xi32, #tpu.memory_space<vmem>>, vector<1x1x1xi32>
    %81 = vector.shape_cast %80 : vector<1x1x1xi32> to vector<1x1xi32>
    %c11_i32 = arith.constant 11 : i32
    %82 = vector.broadcast %c11_i32 : i32 to vector<1x128xi32>
    %83 = arith.cmpi eq, %1, %82 : vector<1x128xi32>
    %84 = vector.shape_cast %81 : vector<1x1xi32> to vector<1x1xi32>
    %85 = vector.broadcast %84 : vector<1x1xi32> to vector<1x128xi32>
    %86 = arith.select %83, %85, %79 : vector<1x128xi1>, vector<1x128xi32>
    %c0_28 = arith.constant 0 : index
    %c12 = arith.constant 12 : index
    %c0_29 = arith.constant 0 : index
    %87 = vector.load %arg2[%c0_28, %c12, %c0_29] : memref<1x128x1xi32, #tpu.memory_space<vmem>>, vector<1x1x1xi32>
    %88 = vector.shape_cast %87 : vector<1x1x1xi32> to vector<1x1xi32>
    %c12_i32 = arith.constant 12 : i32
    %89 = vector.broadcast %c12_i32 : i32 to vector<1x128xi32>
    %90 = arith.cmpi eq, %1, %89 : vector<1x128xi32>
    %91 = vector.shape_cast %88 : vector<1x1xi32> to vector<1x1xi32>
    %92 = vector.broadcast %91 : vector<1x1xi32> to vector<1x128xi32>
    %93 = arith.select %90, %92, %86 : vector<1x128xi1>, vector<1x128xi32>
    %c0_30 = arith.constant 0 : index
    %c13 = arith.constant 13 : index
    %c0_31 = arith.constant 0 : index
    %94 = vector.load %arg2[%c0_30, %c13, %c0_31] : memref<1x128x1xi32, #tpu.memory_space<vmem>>, vector<1x1x1xi32>
    %95 = vector.shape_cast %94 : vector<1x1x1xi32> to vector<1x1xi32>
    %c13_i32 = arith.constant 13 : i32
    %96 = vector.broadcast %c13_i32 : i32 to vector<1x128xi32>
    %97 = arith.cmpi eq, %1, %96 : vector<1x128xi32>
    %98 = vector.shape_cast %95 : vector<1x1xi32> to vector<1x1xi32>
    %99 = vector.broadcast %98 : vector<1x1xi32> to vector<1x128xi32>
    %100 = arith.select %97, %99, %93 : vector<1x128xi1>, vector<1x128xi32>
    %c0_32 = arith.constant 0 : index
    %c14 = arith.constant 14 : index
    %c0_33 = arith.constant 0 : index
    %101 = vector.load %arg2[%c0_32, %c14, %c0_33] : memref<1x128x1xi32, #tpu.memory_space<vmem>>, vector<1x1x1xi32>
    %102 = vector.shape_cast %101 : vector<1x1x1xi32> to vector<1x1xi32>
    %c14_i32 = arith.constant 14 : i32
    %103 = vector.broadcast %c14_i32 : i32 to vector<1x128xi32>
    %104 = arith.cmpi eq, %1, %103 : vector<1x128xi32>
    %105 = vector.shape_cast %102 : vector<1x1xi32> to vector<1x1xi32>
    %106 = vector.broadcast %105 : vector<1x1xi32> to vector<1x128xi32>
    %107 = arith.select %104, %106, %100 : vector<1x128xi1>, vector<1x128xi32>
    %c0_34 = arith.constant 0 : index
    %c15 = arith.constant 15 : index
    %c0_35 = arith.constant 0 : index
    %108 = vector.load %arg2[%c0_34, %c15, %c0_35] : memref<1x128x1xi32, #tpu.memory_space<vmem>>, vector<1x1x1xi32>
    %109 = vector.shape_cast %108 : vector<1x1x1xi32> to vector<1x1xi32>
    %c15_i32 = arith.constant 15 : i32
    %110 = vector.broadcast %c15_i32 : i32 to vector<1x128xi32>
    %111 = arith.cmpi eq, %1, %110 : vector<1x128xi32>
    %112 = vector.shape_cast %109 : vector<1x1xi32> to vector<1x1xi32>
    %113 = vector.broadcast %112 : vector<1x1xi32> to vector<1x128xi32>
    %114 = arith.select %111, %113, %107 : vector<1x128xi1>, vector<1x128xi32>
    %c0_36 = arith.constant 0 : index
    %c16 = arith.constant 16 : index
    %c0_37 = arith.constant 0 : index
    %115 = vector.load %arg2[%c0_36, %c16, %c0_37] : memref<1x128x1xi32, #tpu.memory_space<vmem>>, vector<1x1x1xi32>
    %116 = vector.shape_cast %115 : vector<1x1x1xi32> to vector<1x1xi32>
    %c16_i32 = arith.constant 16 : i32
    %117 = vector.broadcast %c16_i32 : i32 to vector<1x128xi32>
    %118 = arith.cmpi eq, %1, %117 : vector<1x128xi32>
    %119 = vector.shape_cast %116 : vector<1x1xi32> to vector<1x1xi32>
    %120 = vector.broadcast %119 : vector<1x1xi32> to vector<1x128xi32>
    %121 = arith.select %118, %120, %114 : vector<1x128xi1>, vector<1x128xi32>
    %c0_38 = arith.constant 0 : index
    %c17 = arith.constant 17 : index
    %c0_39 = arith.constant 0 : index
    %122 = vector.load %arg2[%c0_38, %c17, %c0_39] : memref<1x128x1xi32, #tpu.memory_space<vmem>>, vector<1x1x1xi32>
    %123 = vector.shape_cast %122 : vector<1x1x1xi32> to vector<1x1xi32>
    %c17_i32 = arith.constant 17 : i32
    %124 = vector.broadcast %c17_i32 : i32 to vector<1x128xi32>
    %125 = arith.cmpi eq, %1, %124 : vector<1x128xi32>
    %126 = vector.shape_cast %123 : vector<1x1xi32> to vector<1x1xi32>
    %127 = vector.broadcast %126 : vector<1x1xi32> to vector<1x128xi32>
    %128 = arith.select %125, %127, %121 : vector<1x128xi1>, vector<1x128xi32>
    %c0_40 = arith.constant 0 : index
    %c18 = arith.constant 18 : index
    %c0_41 = arith.constant 0 : index
    %129 = vector.load %arg2[%c0_40, %c18, %c0_41] : memref<1x128x1xi32, #tpu.memory_space<vmem>>, vector<1x1x1xi32>
    %130 = vector.shape_cast %129 : vector<1x1x1xi32> to vector<1x1xi32>
    %c18_i32 = arith.constant 18 : i32
    %131 = vector.broadcast %c18_i32 : i32 to vector<1x128xi32>
    %132 = arith.cmpi eq, %1, %131 : vector<1x128xi32>
    %133 = vector.shape_cast %130 : vector<1x1xi32> to vector<1x1xi32>
    %134 = vector.broadcast %133 : vector<1x1xi32> to vector<1x128xi32>
    %135 = arith.select %132, %134, %128 : vector<1x128xi1>, vector<1x128xi32>
    %c0_42 = arith.constant 0 : index
    %c19 = arith.constant 19 : index
    %c0_43 = arith.constant 0 : index
    %136 = vector.load %arg2[%c0_42, %c19, %c0_43] : memref<1x128x1xi32, #tpu.memory_space<vmem>>, vector<1x1x1xi32>
    %137 = vector.shape_cast %136 : vector<1x1x1xi32> to vector<1x1xi32>
    %c19_i32 = arith.constant 19 : i32
    %138 = vector.broadcast %c19_i32 : i32 to vector<1x128xi32>
    %139 = arith.cmpi eq, %1, %138 : vector<1x128xi32>
    %140 = vector.shape_cast %137 : vector<1x1xi32> to vector<1x1xi32>
    %141 = vector.broadcast %140 : vector<1x1xi32> to vector<1x128xi32>
    %142 = arith.select %139, %141, %135 : vector<1x128xi1>, vector<1x128xi32>
    %c0_44 = arith.constant 0 : index
    %c20 = arith.constant 20 : index
    %c0_45 = arith.constant 0 : index
    %143 = vector.load %arg2[%c0_44, %c20, %c0_45] : memref<1x128x1xi32, #tpu.memory_space<vmem>>, vector<1x1x1xi32>
    %144 = vector.shape_cast %143 : vector<1x1x1xi32> to vector<1x1xi32>
    %c20_i32 = arith.constant 20 : i32
    %145 = vector.broadcast %c20_i32 : i32 to vector<1x128xi32>
    %146 = arith.cmpi eq, %1, %145 : vector<1x128xi32>
    %147 = vector.shape_cast %144 : vector<1x1xi32> to vector<1x1xi32>
    %148 = vector.broadcast %147 : vector<1x1xi32> to vector<1x128xi32>
    %149 = arith.select %146, %148, %142 : vector<1x128xi1>, vector<1x128xi32>
    %c0_46 = arith.constant 0 : index
    %c21 = arith.constant 21 : index
    %c0_47 = arith.constant 0 : index
    %150 = vector.load %arg2[%c0_46, %c21, %c0_47] : memref<1x128x1xi32, #tpu.memory_space<vmem>>, vector<1x1x1xi32>
    %151 = vector.shape_cast %150 : vector<1x1x1xi32> to vector<1x1xi32>
    %c21_i32 = arith.constant 21 : i32
    %152 = vector.broadcast %c21_i32 : i32 to vector<1x128xi32>
    %153 = arith.cmpi eq, %1, %152 : vector<1x128xi32>
    %154 = vector.shape_cast %151 : vector<1x1xi32> to vector<1x1xi32>
    %155 = vector.broadcast %154 : vector<1x1xi32> to vector<1x128xi32>
    %156 = arith.select %153, %155, %149 : vector<1x128xi1>, vector<1x128xi32>
    %c0_48 = arith.constant 0 : index
    %c22 = arith.constant 22 : index
    %c0_49 = arith.constant 0 : index
    %157 = vector.load %arg2[%c0_48, %c22, %c0_49] : memref<1x128x1xi32, #tpu.memory_space<vmem>>, vector<1x1x1xi32>
    %158 = vector.shape_cast %157 : vector<1x1x1xi32> to vector<1x1xi32>
    %c22_i32 = arith.constant 22 : i32
    %159 = vector.broadcast %c22_i32 : i32 to vector<1x128xi32>
    %160 = arith.cmpi eq, %1, %159 : vector<1x128xi32>
    %161 = vector.shape_cast %158 : vector<1x1xi32> to vector<1x1xi32>
    %162 = vector.broadcast %161 : vector<1x1xi32> to vector<1x128xi32>
    %163 = arith.select %160, %162, %156 : vector<1x128xi1>, vector<1x128xi32>
    %c0_50 = arith.constant 0 : index
    %c23 = arith.constant 23 : index
    %c0_51 = arith.constant 0 : index
    %164 = vector.load %arg2[%c0_50, %c23, %c0_51] : memref<1x128x1xi32, #tpu.memory_space<vmem>>, vector<1x1x1xi32>
    %165 = vector.shape_cast %164 : vector<1x1x1xi32> to vector<1x1xi32>
    %c23_i32 = arith.constant 23 : i32
    %166 = vector.broadcast %c23_i32 : i32 to vector<1x128xi32>
    %167 = arith.cmpi eq, %1, %166 : vector<1x128xi32>
    %168 = vector.shape_cast %165 : vector<1x1xi32> to vector<1x1xi32>
    %169 = vector.broadcast %168 : vector<1x1xi32> to vector<1x128xi32>
    %170 = arith.select %167, %169, %163 : vector<1x128xi1>, vector<1x128xi32>
    %c0_52 = arith.constant 0 : index
    %c24 = arith.constant 24 : index
    %c0_53 = arith.constant 0 : index
    %171 = vector.load %arg2[%c0_52, %c24, %c0_53] : memref<1x128x1xi32, #tpu.memory_space<vmem>>, vector<1x1x1xi32>
    %172 = vector.shape_cast %171 : vector<1x1x1xi32> to vector<1x1xi32>
    %c24_i32 = arith.constant 24 : i32
    %173 = vector.broadcast %c24_i32 : i32 to vector<1x128xi32>
    %174 = arith.cmpi eq, %1, %173 : vector<1x128xi32>
    %175 = vector.shape_cast %172 : vector<1x1xi32> to vector<1x1xi32>
    %176 = vector.broadcast %175 : vector<1x1xi32> to vector<1x128xi32>
    %177 = arith.select %174, %176, %170 : vector<1x128xi1>, vector<1x128xi32>
    %c0_54 = arith.constant 0 : index
    %c25 = arith.constant 25 : index
    %c0_55 = arith.constant 0 : index
    %178 = vector.load %arg2[%c0_54, %c25, %c0_55] : memref<1x128x1xi32, #tpu.memory_space<vmem>>, vector<1x1x1xi32>
    %179 = vector.shape_cast %178 : vector<1x1x1xi32> to vector<1x1xi32>
    %c25_i32 = arith.constant 25 : i32
    %180 = vector.broadcast %c25_i32 : i32 to vector<1x128xi32>
    %181 = arith.cmpi eq, %1, %180 : vector<1x128xi32>
    %182 = vector.shape_cast %179 : vector<1x1xi32> to vector<1x1xi32>
    %183 = vector.broadcast %182 : vector<1x1xi32> to vector<1x128xi32>
    %184 = arith.select %181, %183, %177 : vector<1x128xi1>, vector<1x128xi32>
    %c0_56 = arith.constant 0 : index
    %c26 = arith.constant 26 : index
    %c0_57 = arith.constant 0 : index
    %185 = vector.load %arg2[%c0_56, %c26, %c0_57] : memref<1x128x1xi32, #tpu.memory_space<vmem>>, vector<1x1x1xi32>
    %186 = vector.shape_cast %185 : vector<1x1x1xi32> to vector<1x1xi32>
    %c26_i32 = arith.constant 26 : i32
    %187 = vector.broadcast %c26_i32 : i32 to vector<1x128xi32>
    %188 = arith.cmpi eq, %1, %187 : vector<1x128xi32>
    %189 = vector.shape_cast %186 : vector<1x1xi32> to vector<1x1xi32>
    %190 = vector.broadcast %189 : vector<1x1xi32> to vector<1x128xi32>
    %191 = arith.select %188, %190, %184 : vector<1x128xi1>, vector<1x128xi32>
    %c0_58 = arith.constant 0 : index
    %c27 = arith.constant 27 : index
    %c0_59 = arith.constant 0 : index
    %192 = vector.load %arg2[%c0_58, %c27, %c0_59] : memref<1x128x1xi32, #tpu.memory_space<vmem>>, vector<1x1x1xi32>
    %193 = vector.shape_cast %192 : vector<1x1x1xi32> to vector<1x1xi32>
    %c27_i32 = arith.constant 27 : i32
    %194 = vector.broadcast %c27_i32 : i32 to vector<1x128xi32>
    %195 = arith.cmpi eq, %1, %194 : vector<1x128xi32>
    %196 = vector.shape_cast %193 : vector<1x1xi32> to vector<1x1xi32>
    %197 = vector.broadcast %196 : vector<1x1xi32> to vector<1x128xi32>
    %198 = arith.select %195, %197, %191 : vector<1x128xi1>, vector<1x128xi32>
    %c0_60 = arith.constant 0 : index
    %c28 = arith.constant 28 : index
    %c0_61 = arith.constant 0 : index
    %199 = vector.load %arg2[%c0_60, %c28, %c0_61] : memref<1x128x1xi32, #tpu.memory_space<vmem>>, vector<1x1x1xi32>
    %200 = vector.shape_cast %199 : vector<1x1x1xi32> to vector<1x1xi32>
    %c28_i32 = arith.constant 28 : i32
    %201 = vector.broadcast %c28_i32 : i32 to vector<1x128xi32>
    %202 = arith.cmpi eq, %1, %201 : vector<1x128xi32>
    %203 = vector.shape_cast %200 : vector<1x1xi32> to vector<1x1xi32>
    %204 = vector.broadcast %203 : vector<1x1xi32> to vector<1x128xi32>
    %205 = arith.select %202, %204, %198 : vector<1x128xi1>, vector<1x128xi32>
    %c0_62 = arith.constant 0 : index
    %c29 = arith.constant 29 : index
    %c0_63 = arith.constant 0 : index
    %206 = vector.load %arg2[%c0_62, %c29, %c0_63] : memref<1x128x1xi32, #tpu.memory_space<vmem>>, vector<1x1x1xi32>
    %207 = vector.shape_cast %206 : vector<1x1x1xi32> to vector<1x1xi32>
    %c29_i32 = arith.constant 29 : i32
    %208 = vector.broadcast %c29_i32 : i32 to vector<1x128xi32>
    %209 = arith.cmpi eq, %1, %208 : vector<1x128xi32>
    %210 = vector.shape_cast %207 : vector<1x1xi32> to vector<1x1xi32>
    %211 = vector.broadcast %210 : vector<1x1xi32> to vector<1x128xi32>
    %212 = arith.select %209, %211, %205 : vector<1x128xi1>, vector<1x128xi32>
    %c0_64 = arith.constant 0 : index
    %c30 = arith.constant 30 : index
    %c0_65 = arith.constant 0 : index
    %213 = vector.load %arg2[%c0_64, %c30, %c0_65] : memref<1x128x1xi32, #tpu.memory_space<vmem>>, vector<1x1x1xi32>
    %214 = vector.shape_cast %213 : vector<1x1x1xi32> to vector<1x1xi32>
    %c30_i32 = arith.constant 30 : i32
    %215 = vector.broadcast %c30_i32 : i32 to vector<1x128xi32>
    %216 = arith.cmpi eq, %1, %215 : vector<1x128xi32>
    %217 = vector.shape_cast %214 : vector<1x1xi32> to vector<1x1xi32>
    %218 = vector.broadcast %217 : vector<1x1xi32> to vector<1x128xi32>
    %219 = arith.select %216, %218, %212 : vector<1x128xi1>, vector<1x128xi32>
    %c0_66 = arith.constant 0 : index
    %c31 = arith.constant 31 : index
    %c0_67 = arith.constant 0 : index
    %220 = vector.load %arg2[%c0_66, %c31, %c0_67] : memref<1x128x1xi32, #tpu.memory_space<vmem>>, vector<1x1x1xi32>
    %221 = vector.shape_cast %220 : vector<1x1x1xi32> to vector<1x1xi32>
    %c31_i32 = arith.constant 31 : i32
    %222 = vector.broadcast %c31_i32 : i32 to vector<1x128xi32>
    %223 = arith.cmpi eq, %1, %222 : vector<1x128xi32>
    %224 = vector.shape_cast %221 : vector<1x1xi32> to vector<1x1xi32>
    %225 = vector.broadcast %224 : vector<1x1xi32> to vector<1x128xi32>
    %226 = arith.select %223, %225, %219 : vector<1x128xi1>, vector<1x128xi32>
    %c0_68 = arith.constant 0 : index
    %c32 = arith.constant 32 : index
    %c0_69 = arith.constant 0 : index
    %227 = vector.load %arg2[%c0_68, %c32, %c0_69] : memref<1x128x1xi32, #tpu.memory_space<vmem>>, vector<1x1x1xi32>
    %228 = vector.shape_cast %227 : vector<1x1x1xi32> to vector<1x1xi32>
    %c32_i32 = arith.constant 32 : i32
    %229 = vector.broadcast %c32_i32 : i32 to vector<1x128xi32>
    %230 = arith.cmpi eq, %1, %229 : vector<1x128xi32>
    %231 = vector.shape_cast %228 : vector<1x1xi32> to vector<1x1xi32>
    %232 = vector.broadcast %231 : vector<1x1xi32> to vector<1x128xi32>
    %233 = arith.select %230, %232, %226 : vector<1x128xi1>, vector<1x128xi32>
    %c0_70 = arith.constant 0 : index
    %c33 = arith.constant 33 : index
    %c0_71 = arith.constant 0 : index
    %234 = vector.load %arg2[%c0_70, %c33, %c0_71] : memref<1x128x1xi32, #tpu.memory_space<vmem>>, vector<1x1x1xi32>
    %235 = vector.shape_cast %234 : vector<1x1x1xi32> to vector<1x1xi32>
    %c33_i32 = arith.constant 33 : i32
    %236 = vector.broadcast %c33_i32 : i32 to vector<1x128xi32>
    %237 = arith.cmpi eq, %1, %236 : vector<1x128xi32>
    %238 = vector.shape_cast %235 : vector<1x1xi32> to vector<1x1xi32>
    %239 = vector.broadcast %238 : vector<1x1xi32> to vector<1x128xi32>
    %240 = arith.select %237, %239, %233 : vector<1x128xi1>, vector<1x128xi32>
    %c0_72 = arith.constant 0 : index
    %c34 = arith.constant 34 : index
    %c0_73 = arith.constant 0 : index
    %241 = vector.load %arg2[%c0_72, %c34, %c0_73] : memref<1x128x1xi32, #tpu.memory_space<vmem>>, vector<1x1x1xi32>
    %242 = vector.shape_cast %241 : vector<1x1x1xi32> to vector<1x1xi32>
    %c34_i32 = arith.constant 34 : i32
    %243 = vector.broadcast %c34_i32 : i32 to vector<1x128xi32>
    %244 = arith.cmpi eq, %1, %243 : vector<1x128xi32>
    %245 = vector.shape_cast %242 : vector<1x1xi32> to vector<1x1xi32>
    %246 = vector.broadcast %245 : vector<1x1xi32> to vector<1x128xi32>
    %247 = arith.select %244, %246, %240 : vector<1x128xi1>, vector<1x128xi32>
    %c0_74 = arith.constant 0 : index
    %c35 = arith.constant 35 : index
    %c0_75 = arith.constant 0 : index
    %248 = vector.load %arg2[%c0_74, %c35, %c0_75] : memref<1x128x1xi32, #tpu.memory_space<vmem>>, vector<1x1x1xi32>
    %249 = vector.shape_cast %248 : vector<1x1x1xi32> to vector<1x1xi32>
    %c35_i32 = arith.constant 35 : i32
    %250 = vector.broadcast %c35_i32 : i32 to vector<1x128xi32>
    %251 = arith.cmpi eq, %1, %250 : vector<1x128xi32>
    %252 = vector.shape_cast %249 : vector<1x1xi32> to vector<1x1xi32>
    %253 = vector.broadcast %252 : vector<1x1xi32> to vector<1x128xi32>
    %254 = arith.select %251, %253, %247 : vector<1x128xi1>, vector<1x128xi32>
    %c0_76 = arith.constant 0 : index
    %c36 = arith.constant 36 : index
    %c0_77 = arith.constant 0 : index
    %255 = vector.load %arg2[%c0_76, %c36, %c0_77] : memref<1x128x1xi32, #tpu.memory_space<vmem>>, vector<1x1x1xi32>
    %256 = vector.shape_cast %255 : vector<1x1x1xi32> to vector<1x1xi32>
    %c36_i32 = arith.constant 36 : i32
    %257 = vector.broadcast %c36_i32 : i32 to vector<1x128xi32>
    %258 = arith.cmpi eq, %1, %257 : vector<1x128xi32>
    %259 = vector.shape_cast %256 : vector<1x1xi32> to vector<1x1xi32>
    %260 = vector.broadcast %259 : vector<1x1xi32> to vector<1x128xi32>
    %261 = arith.select %258, %260, %254 : vector<1x128xi1>, vector<1x128xi32>
    %c0_78 = arith.constant 0 : index
    %c37 = arith.constant 37 : index
    %c0_79 = arith.constant 0 : index
    %262 = vector.load %arg2[%c0_78, %c37, %c0_79] : memref<1x128x1xi32, #tpu.memory_space<vmem>>, vector<1x1x1xi32>
    %263 = vector.shape_cast %262 : vector<1x1x1xi32> to vector<1x1xi32>
    %c37_i32 = arith.constant 37 : i32
    %264 = vector.broadcast %c37_i32 : i32 to vector<1x128xi32>
    %265 = arith.cmpi eq, %1, %264 : vector<1x128xi32>
    %266 = vector.shape_cast %263 : vector<1x1xi32> to vector<1x1xi32>
    %267 = vector.broadcast %266 : vector<1x1xi32> to vector<1x128xi32>
    %268 = arith.select %265, %267, %261 : vector<1x128xi1>, vector<1x128xi32>
    %c0_80 = arith.constant 0 : index
    %c38 = arith.constant 38 : index
    %c0_81 = arith.constant 0 : index
    %269 = vector.load %arg2[%c0_80, %c38, %c0_81] : memref<1x128x1xi32, #tpu.memory_space<vmem>>, vector<1x1x1xi32>
    %270 = vector.shape_cast %269 : vector<1x1x1xi32> to vector<1x1xi32>
    %c38_i32 = arith.constant 38 : i32
    %271 = vector.broadcast %c38_i32 : i32 to vector<1x128xi32>
    %272 = arith.cmpi eq, %1, %271 : vector<1x128xi32>
    %273 = vector.shape_cast %270 : vector<1x1xi32> to vector<1x1xi32>
    %274 = vector.broadcast %273 : vector<1x1xi32> to vector<1x128xi32>
    %275 = arith.select %272, %274, %268 : vector<1x128xi1>, vector<1x128xi32>
    %c0_82 = arith.constant 0 : index
    %c39 = arith.constant 39 : index
    %c0_83 = arith.constant 0 : index
    %276 = vector.load %arg2[%c0_82, %c39, %c0_83] : memref<1x128x1xi32, #tpu.memory_space<vmem>>, vector<1x1x1xi32>
    %277 = vector.shape_cast %276 : vector<1x1x1xi32> to vector<1x1xi32>
    %c39_i32 = arith.constant 39 : i32
    %278 = vector.broadcast %c39_i32 : i32 to vector<1x128xi32>
    %279 = arith.cmpi eq, %1, %278 : vector<1x128xi32>
    %280 = vector.shape_cast %277 : vector<1x1xi32> to vector<1x1xi32>
    %281 = vector.broadcast %280 : vector<1x1xi32> to vector<1x128xi32>
    %282 = arith.select %279, %281, %275 : vector<1x128xi1>, vector<1x128xi32>
    %c0_84 = arith.constant 0 : index
    %c40 = arith.constant 40 : index
    %c0_85 = arith.constant 0 : index
    %283 = vector.load %arg2[%c0_84, %c40, %c0_85] : memref<1x128x1xi32, #tpu.memory_space<vmem>>, vector<1x1x1xi32>
    %284 = vector.shape_cast %283 : vector<1x1x1xi32> to vector<1x1xi32>
    %c40_i32 = arith.constant 40 : i32
    %285 = vector.broadcast %c40_i32 : i32 to vector<1x128xi32>
    %286 = arith.cmpi eq, %1, %285 : vector<1x128xi32>
    %287 = vector.shape_cast %284 : vector<1x1xi32> to vector<1x1xi32>
    %288 = vector.broadcast %287 : vector<1x1xi32> to vector<1x128xi32>
    %289 = arith.select %286, %288, %282 : vector<1x128xi1>, vector<1x128xi32>
    %c0_86 = arith.constant 0 : index
    %c41 = arith.constant 41 : index
    %c0_87 = arith.constant 0 : index
    %290 = vector.load %arg2[%c0_86, %c41, %c0_87] : memref<1x128x1xi32, #tpu.memory_space<vmem>>, vector<1x1x1xi32>
    %291 = vector.shape_cast %290 : vector<1x1x1xi32> to vector<1x1xi32>
    %c41_i32 = arith.constant 41 : i32
    %292 = vector.broadcast %c41_i32 : i32 to vector<1x128xi32>
    %293 = arith.cmpi eq, %1, %292 : vector<1x128xi32>
    %294 = vector.shape_cast %291 : vector<1x1xi32> to vector<1x1xi32>
    %295 = vector.broadcast %294 : vector<1x1xi32> to vector<1x128xi32>
    %296 = arith.select %293, %295, %289 : vector<1x128xi1>, vector<1x128xi32>
    %c0_88 = arith.constant 0 : index
    %c42 = arith.constant 42 : index
    %c0_89 = arith.constant 0 : index
    %297 = vector.load %arg2[%c0_88, %c42, %c0_89] : memref<1x128x1xi32, #tpu.memory_space<vmem>>, vector<1x1x1xi32>
    %298 = vector.shape_cast %297 : vector<1x1x1xi32> to vector<1x1xi32>
    %c42_i32 = arith.constant 42 : i32
    %299 = vector.broadcast %c42_i32 : i32 to vector<1x128xi32>
    %300 = arith.cmpi eq, %1, %299 : vector<1x128xi32>
    %301 = vector.shape_cast %298 : vector<1x1xi32> to vector<1x1xi32>
    %302 = vector.broadcast %301 : vector<1x1xi32> to vector<1x128xi32>
    %303 = arith.select %300, %302, %296 : vector<1x128xi1>, vector<1x128xi32>
    %c0_90 = arith.constant 0 : index
    %c43 = arith.constant 43 : index
    %c0_91 = arith.constant 0 : index
    %304 = vector.load %arg2[%c0_90, %c43, %c0_91] : memref<1x128x1xi32, #tpu.memory_space<vmem>>, vector<1x1x1xi32>
    %305 = vector.shape_cast %304 : vector<1x1x1xi32> to vector<1x1xi32>
    %c43_i32 = arith.constant 43 : i32
    %306 = vector.broadcast %c43_i32 : i32 to vector<1x128xi32>
    %307 = arith.cmpi eq, %1, %306 : vector<1x128xi32>
    %308 = vector.shape_cast %305 : vector<1x1xi32> to vector<1x1xi32>
    %309 = vector.broadcast %308 : vector<1x1xi32> to vector<1x128xi32>
    %310 = arith.select %307, %309, %303 : vector<1x128xi1>, vector<1x128xi32>
    %c0_92 = arith.constant 0 : index
    %c44 = arith.constant 44 : index
    %c0_93 = arith.constant 0 : index
    %311 = vector.load %arg2[%c0_92, %c44, %c0_93] : memref<1x128x1xi32, #tpu.memory_space<vmem>>, vector<1x1x1xi32>
    %312 = vector.shape_cast %311 : vector<1x1x1xi32> to vector<1x1xi32>
    %c44_i32 = arith.constant 44 : i32
    %313 = vector.broadcast %c44_i32 : i32 to vector<1x128xi32>
    %314 = arith.cmpi eq, %1, %313 : vector<1x128xi32>
    %315 = vector.shape_cast %312 : vector<1x1xi32> to vector<1x1xi32>
    %316 = vector.broadcast %315 : vector<1x1xi32> to vector<1x128xi32>
    %317 = arith.select %314, %316, %310 : vector<1x128xi1>, vector<1x128xi32>
    %c0_94 = arith.constant 0 : index
    %c45 = arith.constant 45 : index
    %c0_95 = arith.constant 0 : index
    %318 = vector.load %arg2[%c0_94, %c45, %c0_95] : memref<1x128x1xi32, #tpu.memory_space<vmem>>, vector<1x1x1xi32>
    %319 = vector.shape_cast %318 : vector<1x1x1xi32> to vector<1x1xi32>
    %c45_i32 = arith.constant 45 : i32
    %320 = vector.broadcast %c45_i32 : i32 to vector<1x128xi32>
    %321 = arith.cmpi eq, %1, %320 : vector<1x128xi32>
    %322 = vector.shape_cast %319 : vector<1x1xi32> to vector<1x1xi32>
    %323 = vector.broadcast %322 : vector<1x1xi32> to vector<1x128xi32>
    %324 = arith.select %321, %323, %317 : vector<1x128xi1>, vector<1x128xi32>
    %c0_96 = arith.constant 0 : index
    %c46 = arith.constant 46 : index
    %c0_97 = arith.constant 0 : index
    %325 = vector.load %arg2[%c0_96, %c46, %c0_97] : memref<1x128x1xi32, #tpu.memory_space<vmem>>, vector<1x1x1xi32>
    %326 = vector.shape_cast %325 : vector<1x1x1xi32> to vector<1x1xi32>
    %c46_i32 = arith.constant 46 : i32
    %327 = vector.broadcast %c46_i32 : i32 to vector<1x128xi32>
    %328 = arith.cmpi eq, %1, %327 : vector<1x128xi32>
    %329 = vector.shape_cast %326 : vector<1x1xi32> to vector<1x1xi32>
    %330 = vector.broadcast %329 : vector<1x1xi32> to vector<1x128xi32>
    %331 = arith.select %328, %330, %324 : vector<1x128xi1>, vector<1x128xi32>
    %c0_98 = arith.constant 0 : index
    %c47 = arith.constant 47 : index
    %c0_99 = arith.constant 0 : index
    %332 = vector.load %arg2[%c0_98, %c47, %c0_99] : memref<1x128x1xi32, #tpu.memory_space<vmem>>, vector<1x1x1xi32>
    %333 = vector.shape_cast %332 : vector<1x1x1xi32> to vector<1x1xi32>
    %c47_i32 = arith.constant 47 : i32
    %334 = vector.broadcast %c47_i32 : i32 to vector<1x128xi32>
    %335 = arith.cmpi eq, %1, %334 : vector<1x128xi32>
    %336 = vector.shape_cast %333 : vector<1x1xi32> to vector<1x1xi32>
    %337 = vector.broadcast %336 : vector<1x1xi32> to vector<1x128xi32>
    %338 = arith.select %335, %337, %331 : vector<1x128xi1>, vector<1x128xi32>
    %c0_100 = arith.constant 0 : index
    %c48 = arith.constant 48 : index
    %c0_101 = arith.constant 0 : index
    %339 = vector.load %arg2[%c0_100, %c48, %c0_101] : memref<1x128x1xi32, #tpu.memory_space<vmem>>, vector<1x1x1xi32>
    %340 = vector.shape_cast %339 : vector<1x1x1xi32> to vector<1x1xi32>
    %c48_i32 = arith.constant 48 : i32
    %341 = vector.broadcast %c48_i32 : i32 to vector<1x128xi32>
    %342 = arith.cmpi eq, %1, %341 : vector<1x128xi32>
    %343 = vector.shape_cast %340 : vector<1x1xi32> to vector<1x1xi32>
    %344 = vector.broadcast %343 : vector<1x1xi32> to vector<1x128xi32>
    %345 = arith.select %342, %344, %338 : vector<1x128xi1>, vector<1x128xi32>
    %c0_102 = arith.constant 0 : index
    %c49 = arith.constant 49 : index
    %c0_103 = arith.constant 0 : index
    %346 = vector.load %arg2[%c0_102, %c49, %c0_103] : memref<1x128x1xi32, #tpu.memory_space<vmem>>, vector<1x1x1xi32>
    %347 = vector.shape_cast %346 : vector<1x1x1xi32> to vector<1x1xi32>
    %c49_i32 = arith.constant 49 : i32
    %348 = vector.broadcast %c49_i32 : i32 to vector<1x128xi32>
    %349 = arith.cmpi eq, %1, %348 : vector<1x128xi32>
    %350 = vector.shape_cast %347 : vector<1x1xi32> to vector<1x1xi32>
    %351 = vector.broadcast %350 : vector<1x1xi32> to vector<1x128xi32>
    %352 = arith.select %349, %351, %345 : vector<1x128xi1>, vector<1x128xi32>
    %c0_104 = arith.constant 0 : index
    %c50 = arith.constant 50 : index
    %c0_105 = arith.constant 0 : index
    %353 = vector.load %arg2[%c0_104, %c50, %c0_105] : memref<1x128x1xi32, #tpu.memory_space<vmem>>, vector<1x1x1xi32>
    %354 = vector.shape_cast %353 : vector<1x1x1xi32> to vector<1x1xi32>
    %c50_i32 = arith.constant 50 : i32
    %355 = vector.broadcast %c50_i32 : i32 to vector<1x128xi32>
    %356 = arith.cmpi eq, %1, %355 : vector<1x128xi32>
    %357 = vector.shape_cast %354 : vector<1x1xi32> to vector<1x1xi32>
    %358 = vector.broadcast %357 : vector<1x1xi32> to vector<1x128xi32>
    %359 = arith.select %356, %358, %352 : vector<1x128xi1>, vector<1x128xi32>
    %c0_106 = arith.constant 0 : index
    %c51 = arith.constant 51 : index
    %c0_107 = arith.constant 0 : index
    %360 = vector.load %arg2[%c0_106, %c51, %c0_107] : memref<1x128x1xi32, #tpu.memory_space<vmem>>, vector<1x1x1xi32>
    %361 = vector.shape_cast %360 : vector<1x1x1xi32> to vector<1x1xi32>
    %c51_i32 = arith.constant 51 : i32
    %362 = vector.broadcast %c51_i32 : i32 to vector<1x128xi32>
    %363 = arith.cmpi eq, %1, %362 : vector<1x128xi32>
    %364 = vector.shape_cast %361 : vector<1x1xi32> to vector<1x1xi32>
    %365 = vector.broadcast %364 : vector<1x1xi32> to vector<1x128xi32>
    %366 = arith.select %363, %365, %359 : vector<1x128xi1>, vector<1x128xi32>
    %c0_108 = arith.constant 0 : index
    %c52 = arith.constant 52 : index
    %c0_109 = arith.constant 0 : index
    %367 = vector.load %arg2[%c0_108, %c52, %c0_109] : memref<1x128x1xi32, #tpu.memory_space<vmem>>, vector<1x1x1xi32>
    %368 = vector.shape_cast %367 : vector<1x1x1xi32> to vector<1x1xi32>
    %c52_i32 = arith.constant 52 : i32
    %369 = vector.broadcast %c52_i32 : i32 to vector<1x128xi32>
    %370 = arith.cmpi eq, %1, %369 : vector<1x128xi32>
    %371 = vector.shape_cast %368 : vector<1x1xi32> to vector<1x1xi32>
    %372 = vector.broadcast %371 : vector<1x1xi32> to vector<1x128xi32>
    %373 = arith.select %370, %372, %366 : vector<1x128xi1>, vector<1x128xi32>
    %c0_110 = arith.constant 0 : index
    %c53 = arith.constant 53 : index
    %c0_111 = arith.constant 0 : index
    %374 = vector.load %arg2[%c0_110, %c53, %c0_111] : memref<1x128x1xi32, #tpu.memory_space<vmem>>, vector<1x1x1xi32>
    %375 = vector.shape_cast %374 : vector<1x1x1xi32> to vector<1x1xi32>
    %c53_i32 = arith.constant 53 : i32
    %376 = vector.broadcast %c53_i32 : i32 to vector<1x128xi32>
    %377 = arith.cmpi eq, %1, %376 : vector<1x128xi32>
    %378 = vector.shape_cast %375 : vector<1x1xi32> to vector<1x1xi32>
    %379 = vector.broadcast %378 : vector<1x1xi32> to vector<1x128xi32>
    %380 = arith.select %377, %379, %373 : vector<1x128xi1>, vector<1x128xi32>
    %c0_112 = arith.constant 0 : index
    %c54 = arith.constant 54 : index
    %c0_113 = arith.constant 0 : index
    %381 = vector.load %arg2[%c0_112, %c54, %c0_113] : memref<1x128x1xi32, #tpu.memory_space<vmem>>, vector<1x1x1xi32>
    %382 = vector.shape_cast %381 : vector<1x1x1xi32> to vector<1x1xi32>
    %c54_i32 = arith.constant 54 : i32
    %383 = vector.broadcast %c54_i32 : i32 to vector<1x128xi32>
    %384 = arith.cmpi eq, %1, %383 : vector<1x128xi32>
    %385 = vector.shape_cast %382 : vector<1x1xi32> to vector<1x1xi32>
    %386 = vector.broadcast %385 : vector<1x1xi32> to vector<1x128xi32>
    %387 = arith.select %384, %386, %380 : vector<1x128xi1>, vector<1x128xi32>
    %c0_114 = arith.constant 0 : index
    %c55 = arith.constant 55 : index
    %c0_115 = arith.constant 0 : index
    %388 = vector.load %arg2[%c0_114, %c55, %c0_115] : memref<1x128x1xi32, #tpu.memory_space<vmem>>, vector<1x1x1xi32>
    %389 = vector.shape_cast %388 : vector<1x1x1xi32> to vector<1x1xi32>
    %c55_i32 = arith.constant 55 : i32
    %390 = vector.broadcast %c55_i32 : i32 to vector<1x128xi32>
    %391 = arith.cmpi eq, %1, %390 : vector<1x128xi32>
    %392 = vector.shape_cast %389 : vector<1x1xi32> to vector<1x1xi32>
    %393 = vector.broadcast %392 : vector<1x1xi32> to vector<1x128xi32>
    %394 = arith.select %391, %393, %387 : vector<1x128xi1>, vector<1x128xi32>
    %c0_116 = arith.constant 0 : index
    %c56 = arith.constant 56 : index
    %c0_117 = arith.constant 0 : index
    %395 = vector.load %arg2[%c0_116, %c56, %c0_117] : memref<1x128x1xi32, #tpu.memory_space<vmem>>, vector<1x1x1xi32>
    %396 = vector.shape_cast %395 : vector<1x1x1xi32> to vector<1x1xi32>
    %c56_i32 = arith.constant 56 : i32
    %397 = vector.broadcast %c56_i32 : i32 to vector<1x128xi32>
    %398 = arith.cmpi eq, %1, %397 : vector<1x128xi32>
    %399 = vector.shape_cast %396 : vector<1x1xi32> to vector<1x1xi32>
    %400 = vector.broadcast %399 : vector<1x1xi32> to vector<1x128xi32>
    %401 = arith.select %398, %400, %394 : vector<1x128xi1>, vector<1x128xi32>
    %c0_118 = arith.constant 0 : index
    %c57 = arith.constant 57 : index
    %c0_119 = arith.constant 0 : index
    %402 = vector.load %arg2[%c0_118, %c57, %c0_119] : memref<1x128x1xi32, #tpu.memory_space<vmem>>, vector<1x1x1xi32>
    %403 = vector.shape_cast %402 : vector<1x1x1xi32> to vector<1x1xi32>
    %c57_i32 = arith.constant 57 : i32
    %404 = vector.broadcast %c57_i32 : i32 to vector<1x128xi32>
    %405 = arith.cmpi eq, %1, %404 : vector<1x128xi32>
    %406 = vector.shape_cast %403 : vector<1x1xi32> to vector<1x1xi32>
    %407 = vector.broadcast %406 : vector<1x1xi32> to vector<1x128xi32>
    %408 = arith.select %405, %407, %401 : vector<1x128xi1>, vector<1x128xi32>
    %c0_120 = arith.constant 0 : index
    %c58 = arith.constant 58 : index
    %c0_121 = arith.constant 0 : index
    %409 = vector.load %arg2[%c0_120, %c58, %c0_121] : memref<1x128x1xi32, #tpu.memory_space<vmem>>, vector<1x1x1xi32>
    %410 = vector.shape_cast %409 : vector<1x1x1xi32> to vector<1x1xi32>
    %c58_i32 = arith.constant 58 : i32
    %411 = vector.broadcast %c58_i32 : i32 to vector<1x128xi32>
    %412 = arith.cmpi eq, %1, %411 : vector<1x128xi32>
    %413 = vector.shape_cast %410 : vector<1x1xi32> to vector<1x1xi32>
    %414 = vector.broadcast %413 : vector<1x1xi32> to vector<1x128xi32>
    %415 = arith.select %412, %414, %408 : vector<1x128xi1>, vector<1x128xi32>
    %c0_122 = arith.constant 0 : index
    %c59 = arith.constant 59 : index
    %c0_123 = arith.constant 0 : index
    %416 = vector.load %arg2[%c0_122, %c59, %c0_123] : memref<1x128x1xi32, #tpu.memory_space<vmem>>, vector<1x1x1xi32>
    %417 = vector.shape_cast %416 : vector<1x1x1xi32> to vector<1x1xi32>
    %c59_i32 = arith.constant 59 : i32
    %418 = vector.broadcast %c59_i32 : i32 to vector<1x128xi32>
    %419 = arith.cmpi eq, %1, %418 : vector<1x128xi32>
    %420 = vector.shape_cast %417 : vector<1x1xi32> to vector<1x1xi32>
    %421 = vector.broadcast %420 : vector<1x1xi32> to vector<1x128xi32>
    %422 = arith.select %419, %421, %415 : vector<1x128xi1>, vector<1x128xi32>
    %c0_124 = arith.constant 0 : index
    %c60 = arith.constant 60 : index
    %c0_125 = arith.constant 0 : index
    %423 = vector.load %arg2[%c0_124, %c60, %c0_125] : memref<1x128x1xi32, #tpu.memory_space<vmem>>, vector<1x1x1xi32>
    %424 = vector.shape_cast %423 : vector<1x1x1xi32> to vector<1x1xi32>
    %c60_i32 = arith.constant 60 : i32
    %425 = vector.broadcast %c60_i32 : i32 to vector<1x128xi32>
    %426 = arith.cmpi eq, %1, %425 : vector<1x128xi32>
    %427 = vector.shape_cast %424 : vector<1x1xi32> to vector<1x1xi32>
    %428 = vector.broadcast %427 : vector<1x1xi32> to vector<1x128xi32>
    %429 = arith.select %426, %428, %422 : vector<1x128xi1>, vector<1x128xi32>
    %c0_126 = arith.constant 0 : index
    %c61 = arith.constant 61 : index
    %c0_127 = arith.constant 0 : index
    %430 = vector.load %arg2[%c0_126, %c61, %c0_127] : memref<1x128x1xi32, #tpu.memory_space<vmem>>, vector<1x1x1xi32>
    %431 = vector.shape_cast %430 : vector<1x1x1xi32> to vector<1x1xi32>
    %c61_i32 = arith.constant 61 : i32
    %432 = vector.broadcast %c61_i32 : i32 to vector<1x128xi32>
    %433 = arith.cmpi eq, %1, %432 : vector<1x128xi32>
    %434 = vector.shape_cast %431 : vector<1x1xi32> to vector<1x1xi32>
    %435 = vector.broadcast %434 : vector<1x1xi32> to vector<1x128xi32>
    %436 = arith.select %433, %435, %429 : vector<1x128xi1>, vector<1x128xi32>
    %c0_128 = arith.constant 0 : index
    %c62 = arith.constant 62 : index
    %c0_129 = arith.constant 0 : index
    %437 = vector.load %arg2[%c0_128, %c62, %c0_129] : memref<1x128x1xi32, #tpu.memory_space<vmem>>, vector<1x1x1xi32>
    %438 = vector.shape_cast %437 : vector<1x1x1xi32> to vector<1x1xi32>
    %c62_i32 = arith.constant 62 : i32
    %439 = vector.broadcast %c62_i32 : i32 to vector<1x128xi32>
    %440 = arith.cmpi eq, %1, %439 : vector<1x128xi32>
    %441 = vector.shape_cast %438 : vector<1x1xi32> to vector<1x1xi32>
    %442 = vector.broadcast %441 : vector<1x1xi32> to vector<1x128xi32>
    %443 = arith.select %440, %442, %436 : vector<1x128xi1>, vector<1x128xi32>
    %c0_130 = arith.constant 0 : index
    %c63 = arith.constant 63 : index
    %c0_131 = arith.constant 0 : index
    %444 = vector.load %arg2[%c0_130, %c63, %c0_131] : memref<1x128x1xi32, #tpu.memory_space<vmem>>, vector<1x1x1xi32>
    %445 = vector.shape_cast %444 : vector<1x1x1xi32> to vector<1x1xi32>
    %c63_i32 = arith.constant 63 : i32
    %446 = vector.broadcast %c63_i32 : i32 to vector<1x128xi32>
    %447 = arith.cmpi eq, %1, %446 : vector<1x128xi32>
    %448 = vector.shape_cast %445 : vector<1x1xi32> to vector<1x1xi32>
    %449 = vector.broadcast %448 : vector<1x1xi32> to vector<1x128xi32>
    %450 = arith.select %447, %449, %443 : vector<1x128xi1>, vector<1x128xi32>
    %c0_132 = arith.constant 0 : index
    %c64 = arith.constant 64 : index
    %c0_133 = arith.constant 0 : index
    %451 = vector.load %arg2[%c0_132, %c64, %c0_133] : memref<1x128x1xi32, #tpu.memory_space<vmem>>, vector<1x1x1xi32>
    %452 = vector.shape_cast %451 : vector<1x1x1xi32> to vector<1x1xi32>
    %c64_i32 = arith.constant 64 : i32
    %453 = vector.broadcast %c64_i32 : i32 to vector<1x128xi32>
    %454 = arith.cmpi eq, %1, %453 : vector<1x128xi32>
    %455 = vector.shape_cast %452 : vector<1x1xi32> to vector<1x1xi32>
    %456 = vector.broadcast %455 : vector<1x1xi32> to vector<1x128xi32>
    %457 = arith.select %454, %456, %450 : vector<1x128xi1>, vector<1x128xi32>
    %c0_134 = arith.constant 0 : index
    %c65 = arith.constant 65 : index
    %c0_135 = arith.constant 0 : index
    %458 = vector.load %arg2[%c0_134, %c65, %c0_135] : memref<1x128x1xi32, #tpu.memory_space<vmem>>, vector<1x1x1xi32>
    %459 = vector.shape_cast %458 : vector<1x1x1xi32> to vector<1x1xi32>
    %c65_i32 = arith.constant 65 : i32
    %460 = vector.broadcast %c65_i32 : i32 to vector<1x128xi32>
    %461 = arith.cmpi eq, %1, %460 : vector<1x128xi32>
    %462 = vector.shape_cast %459 : vector<1x1xi32> to vector<1x1xi32>
    %463 = vector.broadcast %462 : vector<1x1xi32> to vector<1x128xi32>
    %464 = arith.select %461, %463, %457 : vector<1x128xi1>, vector<1x128xi32>
    %c0_136 = arith.constant 0 : index
    %c66 = arith.constant 66 : index
    %c0_137 = arith.constant 0 : index
    %465 = vector.load %arg2[%c0_136, %c66, %c0_137] : memref<1x128x1xi32, #tpu.memory_space<vmem>>, vector<1x1x1xi32>
    %466 = vector.shape_cast %465 : vector<1x1x1xi32> to vector<1x1xi32>
    %c66_i32 = arith.constant 66 : i32
    %467 = vector.broadcast %c66_i32 : i32 to vector<1x128xi32>
    %468 = arith.cmpi eq, %1, %467 : vector<1x128xi32>
    %469 = vector.shape_cast %466 : vector<1x1xi32> to vector<1x1xi32>
    %470 = vector.broadcast %469 : vector<1x1xi32> to vector<1x128xi32>
    %471 = arith.select %468, %470, %464 : vector<1x128xi1>, vector<1x128xi32>
    %c0_138 = arith.constant 0 : index
    %c67 = arith.constant 67 : index
    %c0_139 = arith.constant 0 : index
    %472 = vector.load %arg2[%c0_138, %c67, %c0_139] : memref<1x128x1xi32, #tpu.memory_space<vmem>>, vector<1x1x1xi32>
    %473 = vector.shape_cast %472 : vector<1x1x1xi32> to vector<1x1xi32>
    %c67_i32 = arith.constant 67 : i32
    %474 = vector.broadcast %c67_i32 : i32 to vector<1x128xi32>
    %475 = arith.cmpi eq, %1, %474 : vector<1x128xi32>
    %476 = vector.shape_cast %473 : vector<1x1xi32> to vector<1x1xi32>
    %477 = vector.broadcast %476 : vector<1x1xi32> to vector<1x128xi32>
    %478 = arith.select %475, %477, %471 : vector<1x128xi1>, vector<1x128xi32>
    %c0_140 = arith.constant 0 : index
    %c68 = arith.constant 68 : index
    %c0_141 = arith.constant 0 : index
    %479 = vector.load %arg2[%c0_140, %c68, %c0_141] : memref<1x128x1xi32, #tpu.memory_space<vmem>>, vector<1x1x1xi32>
    %480 = vector.shape_cast %479 : vector<1x1x1xi32> to vector<1x1xi32>
    %c68_i32 = arith.constant 68 : i32
    %481 = vector.broadcast %c68_i32 : i32 to vector<1x128xi32>
    %482 = arith.cmpi eq, %1, %481 : vector<1x128xi32>
    %483 = vector.shape_cast %480 : vector<1x1xi32> to vector<1x1xi32>
    %484 = vector.broadcast %483 : vector<1x1xi32> to vector<1x128xi32>
    %485 = arith.select %482, %484, %478 : vector<1x128xi1>, vector<1x128xi32>
    %c0_142 = arith.constant 0 : index
    %c69 = arith.constant 69 : index
    %c0_143 = arith.constant 0 : index
    %486 = vector.load %arg2[%c0_142, %c69, %c0_143] : memref<1x128x1xi32, #tpu.memory_space<vmem>>, vector<1x1x1xi32>
    %487 = vector.shape_cast %486 : vector<1x1x1xi32> to vector<1x1xi32>
    %c69_i32 = arith.constant 69 : i32
    %488 = vector.broadcast %c69_i32 : i32 to vector<1x128xi32>
    %489 = arith.cmpi eq, %1, %488 : vector<1x128xi32>
    %490 = vector.shape_cast %487 : vector<1x1xi32> to vector<1x1xi32>
    %491 = vector.broadcast %490 : vector<1x1xi32> to vector<1x128xi32>
    %492 = arith.select %489, %491, %485 : vector<1x128xi1>, vector<1x128xi32>
    %c0_144 = arith.constant 0 : index
    %c70 = arith.constant 70 : index
    %c0_145 = arith.constant 0 : index
    %493 = vector.load %arg2[%c0_144, %c70, %c0_145] : memref<1x128x1xi32, #tpu.memory_space<vmem>>, vector<1x1x1xi32>
    %494 = vector.shape_cast %493 : vector<1x1x1xi32> to vector<1x1xi32>
    %c70_i32 = arith.constant 70 : i32
    %495 = vector.broadcast %c70_i32 : i32 to vector<1x128xi32>
    %496 = arith.cmpi eq, %1, %495 : vector<1x128xi32>
    %497 = vector.shape_cast %494 : vector<1x1xi32> to vector<1x1xi32>
    %498 = vector.broadcast %497 : vector<1x1xi32> to vector<1x128xi32>
    %499 = arith.select %496, %498, %492 : vector<1x128xi1>, vector<1x128xi32>
    %c0_146 = arith.constant 0 : index
    %c71 = arith.constant 71 : index
    %c0_147 = arith.constant 0 : index
    %500 = vector.load %arg2[%c0_146, %c71, %c0_147] : memref<1x128x1xi32, #tpu.memory_space<vmem>>, vector<1x1x1xi32>
    %501 = vector.shape_cast %500 : vector<1x1x1xi32> to vector<1x1xi32>
    %c71_i32 = arith.constant 71 : i32
    %502 = vector.broadcast %c71_i32 : i32 to vector<1x128xi32>
    %503 = arith.cmpi eq, %1, %502 : vector<1x128xi32>
    %504 = vector.shape_cast %501 : vector<1x1xi32> to vector<1x1xi32>
    %505 = vector.broadcast %504 : vector<1x1xi32> to vector<1x128xi32>
    %506 = arith.select %503, %505, %499 : vector<1x128xi1>, vector<1x128xi32>
    %c0_148 = arith.constant 0 : index
    %c72 = arith.constant 72 : index
    %c0_149 = arith.constant 0 : index
    %507 = vector.load %arg2[%c0_148, %c72, %c0_149] : memref<1x128x1xi32, #tpu.memory_space<vmem>>, vector<1x1x1xi32>
    %508 = vector.shape_cast %507 : vector<1x1x1xi32> to vector<1x1xi32>
    %c72_i32 = arith.constant 72 : i32
    %509 = vector.broadcast %c72_i32 : i32 to vector<1x128xi32>
    %510 = arith.cmpi eq, %1, %509 : vector<1x128xi32>
    %511 = vector.shape_cast %508 : vector<1x1xi32> to vector<1x1xi32>
    %512 = vector.broadcast %511 : vector<1x1xi32> to vector<1x128xi32>
    %513 = arith.select %510, %512, %506 : vector<1x128xi1>, vector<1x128xi32>
    %c0_150 = arith.constant 0 : index
    %c73 = arith.constant 73 : index
    %c0_151 = arith.constant 0 : index
    %514 = vector.load %arg2[%c0_150, %c73, %c0_151] : memref<1x128x1xi32, #tpu.memory_space<vmem>>, vector<1x1x1xi32>
    %515 = vector.shape_cast %514 : vector<1x1x1xi32> to vector<1x1xi32>
    %c73_i32 = arith.constant 73 : i32
    %516 = vector.broadcast %c73_i32 : i32 to vector<1x128xi32>
    %517 = arith.cmpi eq, %1, %516 : vector<1x128xi32>
    %518 = vector.shape_cast %515 : vector<1x1xi32> to vector<1x1xi32>
    %519 = vector.broadcast %518 : vector<1x1xi32> to vector<1x128xi32>
    %520 = arith.select %517, %519, %513 : vector<1x128xi1>, vector<1x128xi32>
    %c0_152 = arith.constant 0 : index
    %c74 = arith.constant 74 : index
    %c0_153 = arith.constant 0 : index
    %521 = vector.load %arg2[%c0_152, %c74, %c0_153] : memref<1x128x1xi32, #tpu.memory_space<vmem>>, vector<1x1x1xi32>
    %522 = vector.shape_cast %521 : vector<1x1x1xi32> to vector<1x1xi32>
    %c74_i32 = arith.constant 74 : i32
    %523 = vector.broadcast %c74_i32 : i32 to vector<1x128xi32>
    %524 = arith.cmpi eq, %1, %523 : vector<1x128xi32>
    %525 = vector.shape_cast %522 : vector<1x1xi32> to vector<1x1xi32>
    %526 = vector.broadcast %525 : vector<1x1xi32> to vector<1x128xi32>
    %527 = arith.select %524, %526, %520 : vector<1x128xi1>, vector<1x128xi32>
    %c0_154 = arith.constant 0 : index
    %c75 = arith.constant 75 : index
    %c0_155 = arith.constant 0 : index
    %528 = vector.load %arg2[%c0_154, %c75, %c0_155] : memref<1x128x1xi32, #tpu.memory_space<vmem>>, vector<1x1x1xi32>
    %529 = vector.shape_cast %528 : vector<1x1x1xi32> to vector<1x1xi32>
    %c75_i32 = arith.constant 75 : i32
    %530 = vector.broadcast %c75_i32 : i32 to vector<1x128xi32>
    %531 = arith.cmpi eq, %1, %530 : vector<1x128xi32>
    %532 = vector.shape_cast %529 : vector<1x1xi32> to vector<1x1xi32>
    %533 = vector.broadcast %532 : vector<1x1xi32> to vector<1x128xi32>
    %534 = arith.select %531, %533, %527 : vector<1x128xi1>, vector<1x128xi32>
    %c0_156 = arith.constant 0 : index
    %c76 = arith.constant 76 : index
    %c0_157 = arith.constant 0 : index
    %535 = vector.load %arg2[%c0_156, %c76, %c0_157] : memref<1x128x1xi32, #tpu.memory_space<vmem>>, vector<1x1x1xi32>
    %536 = vector.shape_cast %535 : vector<1x1x1xi32> to vector<1x1xi32>
    %c76_i32 = arith.constant 76 : i32
    %537 = vector.broadcast %c76_i32 : i32 to vector<1x128xi32>
    %538 = arith.cmpi eq, %1, %537 : vector<1x128xi32>
    %539 = vector.shape_cast %536 : vector<1x1xi32> to vector<1x1xi32>
    %540 = vector.broadcast %539 : vector<1x1xi32> to vector<1x128xi32>
    %541 = arith.select %538, %540, %534 : vector<1x128xi1>, vector<1x128xi32>
    %c0_158 = arith.constant 0 : index
    %c77 = arith.constant 77 : index
    %c0_159 = arith.constant 0 : index
    %542 = vector.load %arg2[%c0_158, %c77, %c0_159] : memref<1x128x1xi32, #tpu.memory_space<vmem>>, vector<1x1x1xi32>
    %543 = vector.shape_cast %542 : vector<1x1x1xi32> to vector<1x1xi32>
    %c77_i32 = arith.constant 77 : i32
    %544 = vector.broadcast %c77_i32 : i32 to vector<1x128xi32>
    %545 = arith.cmpi eq, %1, %544 : vector<1x128xi32>
    %546 = vector.shape_cast %543 : vector<1x1xi32> to vector<1x1xi32>
    %547 = vector.broadcast %546 : vector<1x1xi32> to vector<1x128xi32>
    %548 = arith.select %545, %547, %541 : vector<1x128xi1>, vector<1x128xi32>
    %c0_160 = arith.constant 0 : index
    %c78 = arith.constant 78 : index
    %c0_161 = arith.constant 0 : index
    %549 = vector.load %arg2[%c0_160, %c78, %c0_161] : memref<1x128x1xi32, #tpu.memory_space<vmem>>, vector<1x1x1xi32>
    %550 = vector.shape_cast %549 : vector<1x1x1xi32> to vector<1x1xi32>
    %c78_i32 = arith.constant 78 : i32
    %551 = vector.broadcast %c78_i32 : i32 to vector<1x128xi32>
    %552 = arith.cmpi eq, %1, %551 : vector<1x128xi32>
    %553 = vector.shape_cast %550 : vector<1x1xi32> to vector<1x1xi32>
    %554 = vector.broadcast %553 : vector<1x1xi32> to vector<1x128xi32>
    %555 = arith.select %552, %554, %548 : vector<1x128xi1>, vector<1x128xi32>
    %c0_162 = arith.constant 0 : index
    %c79 = arith.constant 79 : index
    %c0_163 = arith.constant 0 : index
    %556 = vector.load %arg2[%c0_162, %c79, %c0_163] : memref<1x128x1xi32, #tpu.memory_space<vmem>>, vector<1x1x1xi32>
    %557 = vector.shape_cast %556 : vector<1x1x1xi32> to vector<1x1xi32>
    %c79_i32 = arith.constant 79 : i32
    %558 = vector.broadcast %c79_i32 : i32 to vector<1x128xi32>
    %559 = arith.cmpi eq, %1, %558 : vector<1x128xi32>
    %560 = vector.shape_cast %557 : vector<1x1xi32> to vector<1x1xi32>
    %561 = vector.broadcast %560 : vector<1x1xi32> to vector<1x128xi32>
    %562 = arith.select %559, %561, %555 : vector<1x128xi1>, vector<1x128xi32>
    %c0_164 = arith.constant 0 : index
    %c80 = arith.constant 80 : index
    %c0_165 = arith.constant 0 : index
    %563 = vector.load %arg2[%c0_164, %c80, %c0_165] : memref<1x128x1xi32, #tpu.memory_space<vmem>>, vector<1x1x1xi32>
    %564 = vector.shape_cast %563 : vector<1x1x1xi32> to vector<1x1xi32>
    %c80_i32 = arith.constant 80 : i32
    %565 = vector.broadcast %c80_i32 : i32 to vector<1x128xi32>
    %566 = arith.cmpi eq, %1, %565 : vector<1x128xi32>
    %567 = vector.shape_cast %564 : vector<1x1xi32> to vector<1x1xi32>
    %568 = vector.broadcast %567 : vector<1x1xi32> to vector<1x128xi32>
    %569 = arith.select %566, %568, %562 : vector<1x128xi1>, vector<1x128xi32>
    %c0_166 = arith.constant 0 : index
    %c81 = arith.constant 81 : index
    %c0_167 = arith.constant 0 : index
    %570 = vector.load %arg2[%c0_166, %c81, %c0_167] : memref<1x128x1xi32, #tpu.memory_space<vmem>>, vector<1x1x1xi32>
    %571 = vector.shape_cast %570 : vector<1x1x1xi32> to vector<1x1xi32>
    %c81_i32 = arith.constant 81 : i32
    %572 = vector.broadcast %c81_i32 : i32 to vector<1x128xi32>
    %573 = arith.cmpi eq, %1, %572 : vector<1x128xi32>
    %574 = vector.shape_cast %571 : vector<1x1xi32> to vector<1x1xi32>
    %575 = vector.broadcast %574 : vector<1x1xi32> to vector<1x128xi32>
    %576 = arith.select %573, %575, %569 : vector<1x128xi1>, vector<1x128xi32>
    %c0_168 = arith.constant 0 : index
    %c82 = arith.constant 82 : index
    %c0_169 = arith.constant 0 : index
    %577 = vector.load %arg2[%c0_168, %c82, %c0_169] : memref<1x128x1xi32, #tpu.memory_space<vmem>>, vector<1x1x1xi32>
    %578 = vector.shape_cast %577 : vector<1x1x1xi32> to vector<1x1xi32>
    %c82_i32 = arith.constant 82 : i32
    %579 = vector.broadcast %c82_i32 : i32 to vector<1x128xi32>
    %580 = arith.cmpi eq, %1, %579 : vector<1x128xi32>
    %581 = vector.shape_cast %578 : vector<1x1xi32> to vector<1x1xi32>
    %582 = vector.broadcast %581 : vector<1x1xi32> to vector<1x128xi32>
    %583 = arith.select %580, %582, %576 : vector<1x128xi1>, vector<1x128xi32>
    %c0_170 = arith.constant 0 : index
    %c83 = arith.constant 83 : index
    %c0_171 = arith.constant 0 : index
    %584 = vector.load %arg2[%c0_170, %c83, %c0_171] : memref<1x128x1xi32, #tpu.memory_space<vmem>>, vector<1x1x1xi32>
    %585 = vector.shape_cast %584 : vector<1x1x1xi32> to vector<1x1xi32>
    %c83_i32 = arith.constant 83 : i32
    %586 = vector.broadcast %c83_i32 : i32 to vector<1x128xi32>
    %587 = arith.cmpi eq, %1, %586 : vector<1x128xi32>
    %588 = vector.shape_cast %585 : vector<1x1xi32> to vector<1x1xi32>
    %589 = vector.broadcast %588 : vector<1x1xi32> to vector<1x128xi32>
    %590 = arith.select %587, %589, %583 : vector<1x128xi1>, vector<1x128xi32>
    %c0_172 = arith.constant 0 : index
    %c84 = arith.constant 84 : index
    %c0_173 = arith.constant 0 : index
    %591 = vector.load %arg2[%c0_172, %c84, %c0_173] : memref<1x128x1xi32, #tpu.memory_space<vmem>>, vector<1x1x1xi32>
    %592 = vector.shape_cast %591 : vector<1x1x1xi32> to vector<1x1xi32>
    %c84_i32 = arith.constant 84 : i32
    %593 = vector.broadcast %c84_i32 : i32 to vector<1x128xi32>
    %594 = arith.cmpi eq, %1, %593 : vector<1x128xi32>
    %595 = vector.shape_cast %592 : vector<1x1xi32> to vector<1x1xi32>
    %596 = vector.broadcast %595 : vector<1x1xi32> to vector<1x128xi32>
    %597 = arith.select %594, %596, %590 : vector<1x128xi1>, vector<1x128xi32>
    %c0_174 = arith.constant 0 : index
    %c85 = arith.constant 85 : index
    %c0_175 = arith.constant 0 : index
    %598 = vector.load %arg2[%c0_174, %c85, %c0_175] : memref<1x128x1xi32, #tpu.memory_space<vmem>>, vector<1x1x1xi32>
    %599 = vector.shape_cast %598 : vector<1x1x1xi32> to vector<1x1xi32>
    %c85_i32 = arith.constant 85 : i32
    %600 = vector.broadcast %c85_i32 : i32 to vector<1x128xi32>
    %601 = arith.cmpi eq, %1, %600 : vector<1x128xi32>
    %602 = vector.shape_cast %599 : vector<1x1xi32> to vector<1x1xi32>
    %603 = vector.broadcast %602 : vector<1x1xi32> to vector<1x128xi32>
    %604 = arith.select %601, %603, %597 : vector<1x128xi1>, vector<1x128xi32>
    %c0_176 = arith.constant 0 : index
    %c86 = arith.constant 86 : index
    %c0_177 = arith.constant 0 : index
    %605 = vector.load %arg2[%c0_176, %c86, %c0_177] : memref<1x128x1xi32, #tpu.memory_space<vmem>>, vector<1x1x1xi32>
    %606 = vector.shape_cast %605 : vector<1x1x1xi32> to vector<1x1xi32>
    %c86_i32 = arith.constant 86 : i32
    %607 = vector.broadcast %c86_i32 : i32 to vector<1x128xi32>
    %608 = arith.cmpi eq, %1, %607 : vector<1x128xi32>
    %609 = vector.shape_cast %606 : vector<1x1xi32> to vector<1x1xi32>
    %610 = vector.broadcast %609 : vector<1x1xi32> to vector<1x128xi32>
    %611 = arith.select %608, %610, %604 : vector<1x128xi1>, vector<1x128xi32>
    %c0_178 = arith.constant 0 : index
    %c87 = arith.constant 87 : index
    %c0_179 = arith.constant 0 : index
    %612 = vector.load %arg2[%c0_178, %c87, %c0_179] : memref<1x128x1xi32, #tpu.memory_space<vmem>>, vector<1x1x1xi32>
    %613 = vector.shape_cast %612 : vector<1x1x1xi32> to vector<1x1xi32>
    %c87_i32 = arith.constant 87 : i32
    %614 = vector.broadcast %c87_i32 : i32 to vector<1x128xi32>
    %615 = arith.cmpi eq, %1, %614 : vector<1x128xi32>
    %616 = vector.shape_cast %613 : vector<1x1xi32> to vector<1x1xi32>
    %617 = vector.broadcast %616 : vector<1x1xi32> to vector<1x128xi32>
    %618 = arith.select %615, %617, %611 : vector<1x128xi1>, vector<1x128xi32>
    %c0_180 = arith.constant 0 : index
    %c88 = arith.constant 88 : index
    %c0_181 = arith.constant 0 : index
    %619 = vector.load %arg2[%c0_180, %c88, %c0_181] : memref<1x128x1xi32, #tpu.memory_space<vmem>>, vector<1x1x1xi32>
    %620 = vector.shape_cast %619 : vector<1x1x1xi32> to vector<1x1xi32>
    %c88_i32 = arith.constant 88 : i32
    %621 = vector.broadcast %c88_i32 : i32 to vector<1x128xi32>
    %622 = arith.cmpi eq, %1, %621 : vector<1x128xi32>
    %623 = vector.shape_cast %620 : vector<1x1xi32> to vector<1x1xi32>
    %624 = vector.broadcast %623 : vector<1x1xi32> to vector<1x128xi32>
    %625 = arith.select %622, %624, %618 : vector<1x128xi1>, vector<1x128xi32>
    %c0_182 = arith.constant 0 : index
    %c89 = arith.constant 89 : index
    %c0_183 = arith.constant 0 : index
    %626 = vector.load %arg2[%c0_182, %c89, %c0_183] : memref<1x128x1xi32, #tpu.memory_space<vmem>>, vector<1x1x1xi32>
    %627 = vector.shape_cast %626 : vector<1x1x1xi32> to vector<1x1xi32>
    %c89_i32 = arith.constant 89 : i32
    %628 = vector.broadcast %c89_i32 : i32 to vector<1x128xi32>
    %629 = arith.cmpi eq, %1, %628 : vector<1x128xi32>
    %630 = vector.shape_cast %627 : vector<1x1xi32> to vector<1x1xi32>
    %631 = vector.broadcast %630 : vector<1x1xi32> to vector<1x128xi32>
    %632 = arith.select %629, %631, %625 : vector<1x128xi1>, vector<1x128xi32>
    %c0_184 = arith.constant 0 : index
    %c90 = arith.constant 90 : index
    %c0_185 = arith.constant 0 : index
    %633 = vector.load %arg2[%c0_184, %c90, %c0_185] : memref<1x128x1xi32, #tpu.memory_space<vmem>>, vector<1x1x1xi32>
    %634 = vector.shape_cast %633 : vector<1x1x1xi32> to vector<1x1xi32>
    %c90_i32 = arith.constant 90 : i32
    %635 = vector.broadcast %c90_i32 : i32 to vector<1x128xi32>
    %636 = arith.cmpi eq, %1, %635 : vector<1x128xi32>
    %637 = vector.shape_cast %634 : vector<1x1xi32> to vector<1x1xi32>
    %638 = vector.broadcast %637 : vector<1x1xi32> to vector<1x128xi32>
    %639 = arith.select %636, %638, %632 : vector<1x128xi1>, vector<1x128xi32>
    %c0_186 = arith.constant 0 : index
    %c91 = arith.constant 91 : index
    %c0_187 = arith.constant 0 : index
    %640 = vector.load %arg2[%c0_186, %c91, %c0_187] : memref<1x128x1xi32, #tpu.memory_space<vmem>>, vector<1x1x1xi32>
    %641 = vector.shape_cast %640 : vector<1x1x1xi32> to vector<1x1xi32>
    %c91_i32 = arith.constant 91 : i32
    %642 = vector.broadcast %c91_i32 : i32 to vector<1x128xi32>
    %643 = arith.cmpi eq, %1, %642 : vector<1x128xi32>
    %644 = vector.shape_cast %641 : vector<1x1xi32> to vector<1x1xi32>
    %645 = vector.broadcast %644 : vector<1x1xi32> to vector<1x128xi32>
    %646 = arith.select %643, %645, %639 : vector<1x128xi1>, vector<1x128xi32>
    %c0_188 = arith.constant 0 : index
    %c92 = arith.constant 92 : index
    %c0_189 = arith.constant 0 : index
    %647 = vector.load %arg2[%c0_188, %c92, %c0_189] : memref<1x128x1xi32, #tpu.memory_space<vmem>>, vector<1x1x1xi32>
    %648 = vector.shape_cast %647 : vector<1x1x1xi32> to vector<1x1xi32>
    %c92_i32 = arith.constant 92 : i32
    %649 = vector.broadcast %c92_i32 : i32 to vector<1x128xi32>
    %650 = arith.cmpi eq, %1, %649 : vector<1x128xi32>
    %651 = vector.shape_cast %648 : vector<1x1xi32> to vector<1x1xi32>
    %652 = vector.broadcast %651 : vector<1x1xi32> to vector<1x128xi32>
    %653 = arith.select %650, %652, %646 : vector<1x128xi1>, vector<1x128xi32>
    %c0_190 = arith.constant 0 : index
    %c93 = arith.constant 93 : index
    %c0_191 = arith.constant 0 : index
    %654 = vector.load %arg2[%c0_190, %c93, %c0_191] : memref<1x128x1xi32, #tpu.memory_space<vmem>>, vector<1x1x1xi32>
    %655 = vector.shape_cast %654 : vector<1x1x1xi32> to vector<1x1xi32>
    %c93_i32 = arith.constant 93 : i32
    %656 = vector.broadcast %c93_i32 : i32 to vector<1x128xi32>
    %657 = arith.cmpi eq, %1, %656 : vector<1x128xi32>
    %658 = vector.shape_cast %655 : vector<1x1xi32> to vector<1x1xi32>
    %659 = vector.broadcast %658 : vector<1x1xi32> to vector<1x128xi32>
    %660 = arith.select %657, %659, %653 : vector<1x128xi1>, vector<1x128xi32>
    %c0_192 = arith.constant 0 : index
    %c94 = arith.constant 94 : index
    %c0_193 = arith.constant 0 : index
    %661 = vector.load %arg2[%c0_192, %c94, %c0_193] : memref<1x128x1xi32, #tpu.memory_space<vmem>>, vector<1x1x1xi32>
    %662 = vector.shape_cast %661 : vector<1x1x1xi32> to vector<1x1xi32>
    %c94_i32 = arith.constant 94 : i32
    %663 = vector.broadcast %c94_i32 : i32 to vector<1x128xi32>
    %664 = arith.cmpi eq, %1, %663 : vector<1x128xi32>
    %665 = vector.shape_cast %662 : vector<1x1xi32> to vector<1x1xi32>
    %666 = vector.broadcast %665 : vector<1x1xi32> to vector<1x128xi32>
    %667 = arith.select %664, %666, %660 : vector<1x128xi1>, vector<1x128xi32>
    %c0_194 = arith.constant 0 : index
    %c95 = arith.constant 95 : index
    %c0_195 = arith.constant 0 : index
    %668 = vector.load %arg2[%c0_194, %c95, %c0_195] : memref<1x128x1xi32, #tpu.memory_space<vmem>>, vector<1x1x1xi32>
    %669 = vector.shape_cast %668 : vector<1x1x1xi32> to vector<1x1xi32>
    %c95_i32 = arith.constant 95 : i32
    %670 = vector.broadcast %c95_i32 : i32 to vector<1x128xi32>
    %671 = arith.cmpi eq, %1, %670 : vector<1x128xi32>
    %672 = vector.shape_cast %669 : vector<1x1xi32> to vector<1x1xi32>
    %673 = vector.broadcast %672 : vector<1x1xi32> to vector<1x128xi32>
    %674 = arith.select %671, %673, %667 : vector<1x128xi1>, vector<1x128xi32>
    %c0_196 = arith.constant 0 : index
    %c96 = arith.constant 96 : index
    %c0_197 = arith.constant 0 : index
    %675 = vector.load %arg2[%c0_196, %c96, %c0_197] : memref<1x128x1xi32, #tpu.memory_space<vmem>>, vector<1x1x1xi32>
    %676 = vector.shape_cast %675 : vector<1x1x1xi32> to vector<1x1xi32>
    %c96_i32 = arith.constant 96 : i32
    %677 = vector.broadcast %c96_i32 : i32 to vector<1x128xi32>
    %678 = arith.cmpi eq, %1, %677 : vector<1x128xi32>
    %679 = vector.shape_cast %676 : vector<1x1xi32> to vector<1x1xi32>
    %680 = vector.broadcast %679 : vector<1x1xi32> to vector<1x128xi32>
    %681 = arith.select %678, %680, %674 : vector<1x128xi1>, vector<1x128xi32>
    %c0_198 = arith.constant 0 : index
    %c97 = arith.constant 97 : index
    %c0_199 = arith.constant 0 : index
    %682 = vector.load %arg2[%c0_198, %c97, %c0_199] : memref<1x128x1xi32, #tpu.memory_space<vmem>>, vector<1x1x1xi32>
    %683 = vector.shape_cast %682 : vector<1x1x1xi32> to vector<1x1xi32>
    %c97_i32 = arith.constant 97 : i32
    %684 = vector.broadcast %c97_i32 : i32 to vector<1x128xi32>
    %685 = arith.cmpi eq, %1, %684 : vector<1x128xi32>
    %686 = vector.shape_cast %683 : vector<1x1xi32> to vector<1x1xi32>
    %687 = vector.broadcast %686 : vector<1x1xi32> to vector<1x128xi32>
    %688 = arith.select %685, %687, %681 : vector<1x128xi1>, vector<1x128xi32>
    %c0_200 = arith.constant 0 : index
    %c98 = arith.constant 98 : index
    %c0_201 = arith.constant 0 : index
    %689 = vector.load %arg2[%c0_200, %c98, %c0_201] : memref<1x128x1xi32, #tpu.memory_space<vmem>>, vector<1x1x1xi32>
    %690 = vector.shape_cast %689 : vector<1x1x1xi32> to vector<1x1xi32>
    %c98_i32 = arith.constant 98 : i32
    %691 = vector.broadcast %c98_i32 : i32 to vector<1x128xi32>
    %692 = arith.cmpi eq, %1, %691 : vector<1x128xi32>
    %693 = vector.shape_cast %690 : vector<1x1xi32> to vector<1x1xi32>
    %694 = vector.broadcast %693 : vector<1x1xi32> to vector<1x128xi32>
    %695 = arith.select %692, %694, %688 : vector<1x128xi1>, vector<1x128xi32>
    %c0_202 = arith.constant 0 : index
    %c99 = arith.constant 99 : index
    %c0_203 = arith.constant 0 : index
    %696 = vector.load %arg2[%c0_202, %c99, %c0_203] : memref<1x128x1xi32, #tpu.memory_space<vmem>>, vector<1x1x1xi32>
    %697 = vector.shape_cast %696 : vector<1x1x1xi32> to vector<1x1xi32>
    %c99_i32 = arith.constant 99 : i32
    %698 = vector.broadcast %c99_i32 : i32 to vector<1x128xi32>
    %699 = arith.cmpi eq, %1, %698 : vector<1x128xi32>
    %700 = vector.shape_cast %697 : vector<1x1xi32> to vector<1x1xi32>
    %701 = vector.broadcast %700 : vector<1x1xi32> to vector<1x128xi32>
    %702 = arith.select %699, %701, %695 : vector<1x128xi1>, vector<1x128xi32>
    %c0_204 = arith.constant 0 : index
    %c100 = arith.constant 100 : index
    %c0_205 = arith.constant 0 : index
    %703 = vector.load %arg2[%c0_204, %c100, %c0_205] : memref<1x128x1xi32, #tpu.memory_space<vmem>>, vector<1x1x1xi32>
    %704 = vector.shape_cast %703 : vector<1x1x1xi32> to vector<1x1xi32>
    %c100_i32 = arith.constant 100 : i32
    %705 = vector.broadcast %c100_i32 : i32 to vector<1x128xi32>
    %706 = arith.cmpi eq, %1, %705 : vector<1x128xi32>
    %707 = vector.shape_cast %704 : vector<1x1xi32> to vector<1x1xi32>
    %708 = vector.broadcast %707 : vector<1x1xi32> to vector<1x128xi32>
    %709 = arith.select %706, %708, %702 : vector<1x128xi1>, vector<1x128xi32>
    %c0_206 = arith.constant 0 : index
    %c101 = arith.constant 101 : index
    %c0_207 = arith.constant 0 : index
    %710 = vector.load %arg2[%c0_206, %c101, %c0_207] : memref<1x128x1xi32, #tpu.memory_space<vmem>>, vector<1x1x1xi32>
    %711 = vector.shape_cast %710 : vector<1x1x1xi32> to vector<1x1xi32>
    %c101_i32 = arith.constant 101 : i32
    %712 = vector.broadcast %c101_i32 : i32 to vector<1x128xi32>
    %713 = arith.cmpi eq, %1, %712 : vector<1x128xi32>
    %714 = vector.shape_cast %711 : vector<1x1xi32> to vector<1x1xi32>
    %715 = vector.broadcast %714 : vector<1x1xi32> to vector<1x128xi32>
    %716 = arith.select %713, %715, %709 : vector<1x128xi1>, vector<1x128xi32>
    %c0_208 = arith.constant 0 : index
    %c102 = arith.constant 102 : index
    %c0_209 = arith.constant 0 : index
    %717 = vector.load %arg2[%c0_208, %c102, %c0_209] : memref<1x128x1xi32, #tpu.memory_space<vmem>>, vector<1x1x1xi32>
    %718 = vector.shape_cast %717 : vector<1x1x1xi32> to vector<1x1xi32>
    %c102_i32 = arith.constant 102 : i32
    %719 = vector.broadcast %c102_i32 : i32 to vector<1x128xi32>
    %720 = arith.cmpi eq, %1, %719 : vector<1x128xi32>
    %721 = vector.shape_cast %718 : vector<1x1xi32> to vector<1x1xi32>
    %722 = vector.broadcast %721 : vector<1x1xi32> to vector<1x128xi32>
    %723 = arith.select %720, %722, %716 : vector<1x128xi1>, vector<1x128xi32>
    %c0_210 = arith.constant 0 : index
    %c103 = arith.constant 103 : index
    %c0_211 = arith.constant 0 : index
    %724 = vector.load %arg2[%c0_210, %c103, %c0_211] : memref<1x128x1xi32, #tpu.memory_space<vmem>>, vector<1x1x1xi32>
    %725 = vector.shape_cast %724 : vector<1x1x1xi32> to vector<1x1xi32>
    %c103_i32 = arith.constant 103 : i32
    %726 = vector.broadcast %c103_i32 : i32 to vector<1x128xi32>
    %727 = arith.cmpi eq, %1, %726 : vector<1x128xi32>
    %728 = vector.shape_cast %725 : vector<1x1xi32> to vector<1x1xi32>
    %729 = vector.broadcast %728 : vector<1x1xi32> to vector<1x128xi32>
    %730 = arith.select %727, %729, %723 : vector<1x128xi1>, vector<1x128xi32>
    %c0_212 = arith.constant 0 : index
    %c104 = arith.constant 104 : index
    %c0_213 = arith.constant 0 : index
    %731 = vector.load %arg2[%c0_212, %c104, %c0_213] : memref<1x128x1xi32, #tpu.memory_space<vmem>>, vector<1x1x1xi32>
    %732 = vector.shape_cast %731 : vector<1x1x1xi32> to vector<1x1xi32>
    %c104_i32 = arith.constant 104 : i32
    %733 = vector.broadcast %c104_i32 : i32 to vector<1x128xi32>
    %734 = arith.cmpi eq, %1, %733 : vector<1x128xi32>
    %735 = vector.shape_cast %732 : vector<1x1xi32> to vector<1x1xi32>
    %736 = vector.broadcast %735 : vector<1x1xi32> to vector<1x128xi32>
    %737 = arith.select %734, %736, %730 : vector<1x128xi1>, vector<1x128xi32>
    %c0_214 = arith.constant 0 : index
    %c105 = arith.constant 105 : index
    %c0_215 = arith.constant 0 : index
    %738 = vector.load %arg2[%c0_214, %c105, %c0_215] : memref<1x128x1xi32, #tpu.memory_space<vmem>>, vector<1x1x1xi32>
    %739 = vector.shape_cast %738 : vector<1x1x1xi32> to vector<1x1xi32>
    %c105_i32 = arith.constant 105 : i32
    %740 = vector.broadcast %c105_i32 : i32 to vector<1x128xi32>
    %741 = arith.cmpi eq, %1, %740 : vector<1x128xi32>
    %742 = vector.shape_cast %739 : vector<1x1xi32> to vector<1x1xi32>
    %743 = vector.broadcast %742 : vector<1x1xi32> to vector<1x128xi32>
    %744 = arith.select %741, %743, %737 : vector<1x128xi1>, vector<1x128xi32>
    %c0_216 = arith.constant 0 : index
    %c106 = arith.constant 106 : index
    %c0_217 = arith.constant 0 : index
    %745 = vector.load %arg2[%c0_216, %c106, %c0_217] : memref<1x128x1xi32, #tpu.memory_space<vmem>>, vector<1x1x1xi32>
    %746 = vector.shape_cast %745 : vector<1x1x1xi32> to vector<1x1xi32>
    %c106_i32 = arith.constant 106 : i32
    %747 = vector.broadcast %c106_i32 : i32 to vector<1x128xi32>
    %748 = arith.cmpi eq, %1, %747 : vector<1x128xi32>
    %749 = vector.shape_cast %746 : vector<1x1xi32> to vector<1x1xi32>
    %750 = vector.broadcast %749 : vector<1x1xi32> to vector<1x128xi32>
    %751 = arith.select %748, %750, %744 : vector<1x128xi1>, vector<1x128xi32>
    %c0_218 = arith.constant 0 : index
    %c107 = arith.constant 107 : index
    %c0_219 = arith.constant 0 : index
    %752 = vector.load %arg2[%c0_218, %c107, %c0_219] : memref<1x128x1xi32, #tpu.memory_space<vmem>>, vector<1x1x1xi32>
    %753 = vector.shape_cast %752 : vector<1x1x1xi32> to vector<1x1xi32>
    %c107_i32 = arith.constant 107 : i32
    %754 = vector.broadcast %c107_i32 : i32 to vector<1x128xi32>
    %755 = arith.cmpi eq, %1, %754 : vector<1x128xi32>
    %756 = vector.shape_cast %753 : vector<1x1xi32> to vector<1x1xi32>
    %757 = vector.broadcast %756 : vector<1x1xi32> to vector<1x128xi32>
    %758 = arith.select %755, %757, %751 : vector<1x128xi1>, vector<1x128xi32>
    %c0_220 = arith.constant 0 : index
    %c108 = arith.constant 108 : index
    %c0_221 = arith.constant 0 : index
    %759 = vector.load %arg2[%c0_220, %c108, %c0_221] : memref<1x128x1xi32, #tpu.memory_space<vmem>>, vector<1x1x1xi32>
    %760 = vector.shape_cast %759 : vector<1x1x1xi32> to vector<1x1xi32>
    %c108_i32 = arith.constant 108 : i32
    %761 = vector.broadcast %c108_i32 : i32 to vector<1x128xi32>
    %762 = arith.cmpi eq, %1, %761 : vector<1x128xi32>
    %763 = vector.shape_cast %760 : vector<1x1xi32> to vector<1x1xi32>
    %764 = vector.broadcast %763 : vector<1x1xi32> to vector<1x128xi32>
    %765 = arith.select %762, %764, %758 : vector<1x128xi1>, vector<1x128xi32>
    %c0_222 = arith.constant 0 : index
    %c109 = arith.constant 109 : index
    %c0_223 = arith.constant 0 : index
    %766 = vector.load %arg2[%c0_222, %c109, %c0_223] : memref<1x128x1xi32, #tpu.memory_space<vmem>>, vector<1x1x1xi32>
    %767 = vector.shape_cast %766 : vector<1x1x1xi32> to vector<1x1xi32>
    %c109_i32 = arith.constant 109 : i32
    %768 = vector.broadcast %c109_i32 : i32 to vector<1x128xi32>
    %769 = arith.cmpi eq, %1, %768 : vector<1x128xi32>
    %770 = vector.shape_cast %767 : vector<1x1xi32> to vector<1x1xi32>
    %771 = vector.broadcast %770 : vector<1x1xi32> to vector<1x128xi32>
    %772 = arith.select %769, %771, %765 : vector<1x128xi1>, vector<1x128xi32>
    %c0_224 = arith.constant 0 : index
    %c110 = arith.constant 110 : index
    %c0_225 = arith.constant 0 : index
    %773 = vector.load %arg2[%c0_224, %c110, %c0_225] : memref<1x128x1xi32, #tpu.memory_space<vmem>>, vector<1x1x1xi32>
    %774 = vector.shape_cast %773 : vector<1x1x1xi32> to vector<1x1xi32>
    %c110_i32 = arith.constant 110 : i32
    %775 = vector.broadcast %c110_i32 : i32 to vector<1x128xi32>
    %776 = arith.cmpi eq, %1, %775 : vector<1x128xi32>
    %777 = vector.shape_cast %774 : vector<1x1xi32> to vector<1x1xi32>
    %778 = vector.broadcast %777 : vector<1x1xi32> to vector<1x128xi32>
    %779 = arith.select %776, %778, %772 : vector<1x128xi1>, vector<1x128xi32>
    %c0_226 = arith.constant 0 : index
    %c111 = arith.constant 111 : index
    %c0_227 = arith.constant 0 : index
    %780 = vector.load %arg2[%c0_226, %c111, %c0_227] : memref<1x128x1xi32, #tpu.memory_space<vmem>>, vector<1x1x1xi32>
    %781 = vector.shape_cast %780 : vector<1x1x1xi32> to vector<1x1xi32>
    %c111_i32 = arith.constant 111 : i32
    %782 = vector.broadcast %c111_i32 : i32 to vector<1x128xi32>
    %783 = arith.cmpi eq, %1, %782 : vector<1x128xi32>
    %784 = vector.shape_cast %781 : vector<1x1xi32> to vector<1x1xi32>
    %785 = vector.broadcast %784 : vector<1x1xi32> to vector<1x128xi32>
    %786 = arith.select %783, %785, %779 : vector<1x128xi1>, vector<1x128xi32>
    %c0_228 = arith.constant 0 : index
    %c112 = arith.constant 112 : index
    %c0_229 = arith.constant 0 : index
    %787 = vector.load %arg2[%c0_228, %c112, %c0_229] : memref<1x128x1xi32, #tpu.memory_space<vmem>>, vector<1x1x1xi32>
    %788 = vector.shape_cast %787 : vector<1x1x1xi32> to vector<1x1xi32>
    %c112_i32 = arith.constant 112 : i32
    %789 = vector.broadcast %c112_i32 : i32 to vector<1x128xi32>
    %790 = arith.cmpi eq, %1, %789 : vector<1x128xi32>
    %791 = vector.shape_cast %788 : vector<1x1xi32> to vector<1x1xi32>
    %792 = vector.broadcast %791 : vector<1x1xi32> to vector<1x128xi32>
    %793 = arith.select %790, %792, %786 : vector<1x128xi1>, vector<1x128xi32>
    %c0_230 = arith.constant 0 : index
    %c113 = arith.constant 113 : index
    %c0_231 = arith.constant 0 : index
    %794 = vector.load %arg2[%c0_230, %c113, %c0_231] : memref<1x128x1xi32, #tpu.memory_space<vmem>>, vector<1x1x1xi32>
    %795 = vector.shape_cast %794 : vector<1x1x1xi32> to vector<1x1xi32>
    %c113_i32 = arith.constant 113 : i32
    %796 = vector.broadcast %c113_i32 : i32 to vector<1x128xi32>
    %797 = arith.cmpi eq, %1, %796 : vector<1x128xi32>
    %798 = vector.shape_cast %795 : vector<1x1xi32> to vector<1x1xi32>
    %799 = vector.broadcast %798 : vector<1x1xi32> to vector<1x128xi32>
    %800 = arith.select %797, %799, %793 : vector<1x128xi1>, vector<1x128xi32>
    %c0_232 = arith.constant 0 : index
    %c114 = arith.constant 114 : index
    %c0_233 = arith.constant 0 : index
    %801 = vector.load %arg2[%c0_232, %c114, %c0_233] : memref<1x128x1xi32, #tpu.memory_space<vmem>>, vector<1x1x1xi32>
    %802 = vector.shape_cast %801 : vector<1x1x1xi32> to vector<1x1xi32>
    %c114_i32 = arith.constant 114 : i32
    %803 = vector.broadcast %c114_i32 : i32 to vector<1x128xi32>
    %804 = arith.cmpi eq, %1, %803 : vector<1x128xi32>
    %805 = vector.shape_cast %802 : vector<1x1xi32> to vector<1x1xi32>
    %806 = vector.broadcast %805 : vector<1x1xi32> to vector<1x128xi32>
    %807 = arith.select %804, %806, %800 : vector<1x128xi1>, vector<1x128xi32>
    %c0_234 = arith.constant 0 : index
    %c115 = arith.constant 115 : index
    %c0_235 = arith.constant 0 : index
    %808 = vector.load %arg2[%c0_234, %c115, %c0_235] : memref<1x128x1xi32, #tpu.memory_space<vmem>>, vector<1x1x1xi32>
    %809 = vector.shape_cast %808 : vector<1x1x1xi32> to vector<1x1xi32>
    %c115_i32 = arith.constant 115 : i32
    %810 = vector.broadcast %c115_i32 : i32 to vector<1x128xi32>
    %811 = arith.cmpi eq, %1, %810 : vector<1x128xi32>
    %812 = vector.shape_cast %809 : vector<1x1xi32> to vector<1x1xi32>
    %813 = vector.broadcast %812 : vector<1x1xi32> to vector<1x128xi32>
    %814 = arith.select %811, %813, %807 : vector<1x128xi1>, vector<1x128xi32>
    %c0_236 = arith.constant 0 : index
    %c116 = arith.constant 116 : index
    %c0_237 = arith.constant 0 : index
    %815 = vector.load %arg2[%c0_236, %c116, %c0_237] : memref<1x128x1xi32, #tpu.memory_space<vmem>>, vector<1x1x1xi32>
    %816 = vector.shape_cast %815 : vector<1x1x1xi32> to vector<1x1xi32>
    %c116_i32 = arith.constant 116 : i32
    %817 = vector.broadcast %c116_i32 : i32 to vector<1x128xi32>
    %818 = arith.cmpi eq, %1, %817 : vector<1x128xi32>
    %819 = vector.shape_cast %816 : vector<1x1xi32> to vector<1x1xi32>
    %820 = vector.broadcast %819 : vector<1x1xi32> to vector<1x128xi32>
    %821 = arith.select %818, %820, %814 : vector<1x128xi1>, vector<1x128xi32>
    %c0_238 = arith.constant 0 : index
    %c117 = arith.constant 117 : index
    %c0_239 = arith.constant 0 : index
    %822 = vector.load %arg2[%c0_238, %c117, %c0_239] : memref<1x128x1xi32, #tpu.memory_space<vmem>>, vector<1x1x1xi32>
    %823 = vector.shape_cast %822 : vector<1x1x1xi32> to vector<1x1xi32>
    %c117_i32 = arith.constant 117 : i32
    %824 = vector.broadcast %c117_i32 : i32 to vector<1x128xi32>
    %825 = arith.cmpi eq, %1, %824 : vector<1x128xi32>
    %826 = vector.shape_cast %823 : vector<1x1xi32> to vector<1x1xi32>
    %827 = vector.broadcast %826 : vector<1x1xi32> to vector<1x128xi32>
    %828 = arith.select %825, %827, %821 : vector<1x128xi1>, vector<1x128xi32>
    %c0_240 = arith.constant 0 : index
    %c118 = arith.constant 118 : index
    %c0_241 = arith.constant 0 : index
    %829 = vector.load %arg2[%c0_240, %c118, %c0_241] : memref<1x128x1xi32, #tpu.memory_space<vmem>>, vector<1x1x1xi32>
    %830 = vector.shape_cast %829 : vector<1x1x1xi32> to vector<1x1xi32>
    %c118_i32 = arith.constant 118 : i32
    %831 = vector.broadcast %c118_i32 : i32 to vector<1x128xi32>
    %832 = arith.cmpi eq, %1, %831 : vector<1x128xi32>
    %833 = vector.shape_cast %830 : vector<1x1xi32> to vector<1x1xi32>
    %834 = vector.broadcast %833 : vector<1x1xi32> to vector<1x128xi32>
    %835 = arith.select %832, %834, %828 : vector<1x128xi1>, vector<1x128xi32>
    %c0_242 = arith.constant 0 : index
    %c119 = arith.constant 119 : index
    %c0_243 = arith.constant 0 : index
    %836 = vector.load %arg2[%c0_242, %c119, %c0_243] : memref<1x128x1xi32, #tpu.memory_space<vmem>>, vector<1x1x1xi32>
    %837 = vector.shape_cast %836 : vector<1x1x1xi32> to vector<1x1xi32>
    %c119_i32 = arith.constant 119 : i32
    %838 = vector.broadcast %c119_i32 : i32 to vector<1x128xi32>
    %839 = arith.cmpi eq, %1, %838 : vector<1x128xi32>
    %840 = vector.shape_cast %837 : vector<1x1xi32> to vector<1x1xi32>
    %841 = vector.broadcast %840 : vector<1x1xi32> to vector<1x128xi32>
    %842 = arith.select %839, %841, %835 : vector<1x128xi1>, vector<1x128xi32>
    %c0_244 = arith.constant 0 : index
    %c120 = arith.constant 120 : index
    %c0_245 = arith.constant 0 : index
    %843 = vector.load %arg2[%c0_244, %c120, %c0_245] : memref<1x128x1xi32, #tpu.memory_space<vmem>>, vector<1x1x1xi32>
    %844 = vector.shape_cast %843 : vector<1x1x1xi32> to vector<1x1xi32>
    %c120_i32 = arith.constant 120 : i32
    %845 = vector.broadcast %c120_i32 : i32 to vector<1x128xi32>
    %846 = arith.cmpi eq, %1, %845 : vector<1x128xi32>
    %847 = vector.shape_cast %844 : vector<1x1xi32> to vector<1x1xi32>
    %848 = vector.broadcast %847 : vector<1x1xi32> to vector<1x128xi32>
    %849 = arith.select %846, %848, %842 : vector<1x128xi1>, vector<1x128xi32>
    %c0_246 = arith.constant 0 : index
    %c121 = arith.constant 121 : index
    %c0_247 = arith.constant 0 : index
    %850 = vector.load %arg2[%c0_246, %c121, %c0_247] : memref<1x128x1xi32, #tpu.memory_space<vmem>>, vector<1x1x1xi32>
    %851 = vector.shape_cast %850 : vector<1x1x1xi32> to vector<1x1xi32>
    %c121_i32 = arith.constant 121 : i32
    %852 = vector.broadcast %c121_i32 : i32 to vector<1x128xi32>
    %853 = arith.cmpi eq, %1, %852 : vector<1x128xi32>
    %854 = vector.shape_cast %851 : vector<1x1xi32> to vector<1x1xi32>
    %855 = vector.broadcast %854 : vector<1x1xi32> to vector<1x128xi32>
    %856 = arith.select %853, %855, %849 : vector<1x128xi1>, vector<1x128xi32>
    %c0_248 = arith.constant 0 : index
    %c122 = arith.constant 122 : index
    %c0_249 = arith.constant 0 : index
    %857 = vector.load %arg2[%c0_248, %c122, %c0_249] : memref<1x128x1xi32, #tpu.memory_space<vmem>>, vector<1x1x1xi32>
    %858 = vector.shape_cast %857 : vector<1x1x1xi32> to vector<1x1xi32>
    %c122_i32 = arith.constant 122 : i32
    %859 = vector.broadcast %c122_i32 : i32 to vector<1x128xi32>
    %860 = arith.cmpi eq, %1, %859 : vector<1x128xi32>
    %861 = vector.shape_cast %858 : vector<1x1xi32> to vector<1x1xi32>
    %862 = vector.broadcast %861 : vector<1x1xi32> to vector<1x128xi32>
    %863 = arith.select %860, %862, %856 : vector<1x128xi1>, vector<1x128xi32>
    %c0_250 = arith.constant 0 : index
    %c123 = arith.constant 123 : index
    %c0_251 = arith.constant 0 : index
    %864 = vector.load %arg2[%c0_250, %c123, %c0_251] : memref<1x128x1xi32, #tpu.memory_space<vmem>>, vector<1x1x1xi32>
    %865 = vector.shape_cast %864 : vector<1x1x1xi32> to vector<1x1xi32>
    %c123_i32 = arith.constant 123 : i32
    %866 = vector.broadcast %c123_i32 : i32 to vector<1x128xi32>
    %867 = arith.cmpi eq, %1, %866 : vector<1x128xi32>
    %868 = vector.shape_cast %865 : vector<1x1xi32> to vector<1x1xi32>
    %869 = vector.broadcast %868 : vector<1x1xi32> to vector<1x128xi32>
    %870 = arith.select %867, %869, %863 : vector<1x128xi1>, vector<1x128xi32>
    %c0_252 = arith.constant 0 : index
    %c124 = arith.constant 124 : index
    %c0_253 = arith.constant 0 : index
    %871 = vector.load %arg2[%c0_252, %c124, %c0_253] : memref<1x128x1xi32, #tpu.memory_space<vmem>>, vector<1x1x1xi32>
    %872 = vector.shape_cast %871 : vector<1x1x1xi32> to vector<1x1xi32>
    %c124_i32 = arith.constant 124 : i32
    %873 = vector.broadcast %c124_i32 : i32 to vector<1x128xi32>
    %874 = arith.cmpi eq, %1, %873 : vector<1x128xi32>
    %875 = vector.shape_cast %872 : vector<1x1xi32> to vector<1x1xi32>
    %876 = vector.broadcast %875 : vector<1x1xi32> to vector<1x128xi32>
    %877 = arith.select %874, %876, %870 : vector<1x128xi1>, vector<1x128xi32>
    %c0_254 = arith.constant 0 : index
    %c125 = arith.constant 125 : index
    %c0_255 = arith.constant 0 : index
    %878 = vector.load %arg2[%c0_254, %c125, %c0_255] : memref<1x128x1xi32, #tpu.memory_space<vmem>>, vector<1x1x1xi32>
    %879 = vector.shape_cast %878 : vector<1x1x1xi32> to vector<1x1xi32>
    %c125_i32 = arith.constant 125 : i32
    %880 = vector.broadcast %c125_i32 : i32 to vector<1x128xi32>
    %881 = arith.cmpi eq, %1, %880 : vector<1x128xi32>
    %882 = vector.shape_cast %879 : vector<1x1xi32> to vector<1x1xi32>
    %883 = vector.broadcast %882 : vector<1x1xi32> to vector<1x128xi32>
    %884 = arith.select %881, %883, %877 : vector<1x128xi1>, vector<1x128xi32>
    %c0_256 = arith.constant 0 : index
    %c126 = arith.constant 126 : index
    %c0_257 = arith.constant 0 : index
    %885 = vector.load %arg2[%c0_256, %c126, %c0_257] : memref<1x128x1xi32, #tpu.memory_space<vmem>>, vector<1x1x1xi32>
    %886 = vector.shape_cast %885 : vector<1x1x1xi32> to vector<1x1xi32>
    %c126_i32 = arith.constant 126 : i32
    %887 = vector.broadcast %c126_i32 : i32 to vector<1x128xi32>
    %888 = arith.cmpi eq, %1, %887 : vector<1x128xi32>
    %889 = vector.shape_cast %886 : vector<1x1xi32> to vector<1x1xi32>
    %890 = vector.broadcast %889 : vector<1x1xi32> to vector<1x128xi32>
    %891 = arith.select %888, %890, %884 : vector<1x128xi1>, vector<1x128xi32>
    %c0_258 = arith.constant 0 : index
    %c127 = arith.constant 127 : index
    %c0_259 = arith.constant 0 : index
    %892 = vector.load %arg2[%c0_258, %c127, %c0_259] : memref<1x128x1xi32, #tpu.memory_space<vmem>>, vector<1x1x1xi32>
    %893 = vector.shape_cast %892 : vector<1x1x1xi32> to vector<1x1xi32>
    %c127_i32 = arith.constant 127 : i32
    %894 = vector.broadcast %c127_i32 : i32 to vector<1x128xi32>
    %895 = arith.cmpi eq, %1, %894 : vector<1x128xi32>
    %896 = vector.shape_cast %893 : vector<1x1xi32> to vector<1x1xi32>
    %897 = vector.broadcast %896 : vector<1x1xi32> to vector<1x128xi32>
    %898 = arith.select %895, %897, %891 : vector<1x128xi1>, vector<1x128xi32>
    %c0_260 = arith.constant 0 : index
    %c0_261 = arith.constant 0 : index
    %c0_262 = arith.constant 0 : index
    %899 = vector.load %arg4[%c0_260, %c0_261, %c0_262] : memref<1x1x128xi32, #tpu.memory_space<vmem>>, vector<1x1x128xi32>
    %900 = vector.shape_cast %899 : vector<1x1x128xi32> to vector<1x128xi32>
    %901 = vector.shape_cast %898 : vector<1x128xi32> to vector<1x1x128xi32>
    tpu.vector_store %arg4[%c0_260, %c0_261, %c0_262], %901 {strides = array<i32>} : memref<1x1x128xi32, #tpu.memory_space<vmem>>, vector<1x1x128xi32>,
    return
  }
  func.func @transform_0(%arg0: i32, %arg1: i32) -> (i32, i32, i32) {
    %c0_i32 = arith.constant 0 : i32
    %c0_i32_0 = arith.constant 0 : i32
    %c0_i32_1 = arith.constant 0 : i32
    return %arg0, %c0_i32, %c0_i32_0 : i32, i32, i32
  }
  func.func @transform_1(%arg0: i32, %arg1: i32) -> (i32, i32, i32) {
    %c0_i32 = arith.constant 0 : i32
    %c0_i32_0 = arith.constant 0 : i32
    return %arg0, %arg1, %c0_i32 : i32, i32, i32
  }
  func.func @transform_2(%arg0: i32, %arg1: i32) -> (i32, i32, i32) {
    %c0_i32 = arith.constant 0 : i32
    %c0_i32_0 = arith.constant 0 : i32
    return %arg0, %arg1, %c0_i32 : i32, i32, i32
  }
}

</mosaic_0001>

<llo_original>
// kernel: tpu_custom_call.1
$region0: #{tpu_custom_call.1}
  #allocation0 [shape = 'u32[]', space=smem, size = 0x4, offset = 0x4, fixed_abs, tag = 'smem constant byte address 0x4 - core index']
  #allocation1 [shape = 'u32[144,128]{1,0:T(1,128)}', space=vmem, size = 0x12000, scoped, tag = 'internal scratch']
  %s0 = inlined_call_operand.hbm [shape: s32[2,128,1], index: 0, kind: input, shape index: {}]
  %s1 = inlined_call_operand.hbm [shape: s32[2,1,128], index: 1, kind: input, shape index: {}]
  %s2 = inlined_call_operand.hbm [shape: s32[2,1,128], index: 2, kind: output, shape index: {}]
  %s3 = sld [smem:[#allocation0]]
  $region49: #{tpu_custom_call.1} parent=0
    _
  %s5 = ssub.s32 1, %s3
  %s6 = scalar_select 0, %s5, %s3
  $region1: #{tpu_custom_call.1} parent=0
    #allocation2 [shape = 'u8[131072]{0}', space=vmem, size = 0x20000, scoped, tag = 'input window, operand 0']
    #allocation3 [shape = 's32[2]{0}', space=sflag, size = 0x8, scoped, tag = 'scoped memory for tpu_custom_call.1']
    #allocation4 [shape = 's32[2]{0}', space=sflag, size = 0x8, scoped, tag = 'scoped memory for tpu_custom_call.1']
    #allocation5 [shape = 'u8[1024]{0}', space=vmem, size = 0x400, scoped, tag = 'input window, operand 1']
    #allocation6 [shape = 's32[2]{0}', space=sflag, size = 0x8, scoped, tag = 'scoped memory for tpu_custom_call.1']
    #allocation7 [shape = 'u8[1024]{0}', space=vmem, size = 0x400, scoped, tag = 'output window, operand 0']
    %7 = vsyncpa [#allocation3], 0
    %s8 = scalar_lea.sflag [#allocation3], 1
    %9 = vsyncpa %s8, 0
    %10 = vsyncpa [#allocation6], 0
    %s11 = scalar_lea.sflag [#allocation6], 1
    %12 = vsyncpa %s11, 0
    %13 = vsyncpa [#allocation4], 0
    %s14 = scalar_lea.sflag [#allocation4], 1
    %15 = vsyncpa %s14, 0
    loop: start=0, step=1, limit=4
    $region2: #{tpu_custom_call.1} parent=1 // loop_pre_header
      _
    $region3: #{tpu_custom_call.1} parent=1 // loop_header
      %s17 = sphi 0, %s21
      %p18 = scmp.ge.s32.totalorder %s17, 4
      %s24 = sphi 0, %s36
      %s25 = sphi 0, %s32
      %s26 = sphi 0, %s24
      %s27 = sphi 0, %s25
      %s28 = sphi 0, %s26
      %s29 = sphi 0, %s27
      %s39 = sphi 0, %s41
      %s42 = sphi 0, %s39
      %s43 = sphi 0, %s42
      %s59 = sphi 0, %s43
      %s67 = sphi 0, %s69
      %s70 = sphi 0, %s67
      %s71 = sphi 0, %s70
      %s87 = sphi 0, %s71
      %s95 = sphi 0, %s97
      %s98 = sphi 0, %s95
      %s99 = sphi 0, %s98
      %s115 = sphi 0, %s99
    $region4: #{tpu_custom_call.1} parent=1 // loop_header_branch
      %20 = sbr.rel (%p18) target = $region8
    $region5: #{tpu_custom_call.1} parent=1 // loop_body
      %s22 = ssub.s32 %s17, 1
      %s23 = ssub.s32 %s17, 2
      %s30 = sadd.s32 1, %s25
      %p31 = scmp.ge.s32.totalorder %s30, 1
      %s32 = scalar_select %p31, 0, %s30
      %s33 = sadd.s32 1, %s24
      %s34 = scalar_select %p31, %s33, %s24
      %p35 = scmp.ge.s32.totalorder %s34, 2
      %s36 = scalar_select %p35, 0, %s34
      %s37 = ssub.s32 %s24, %s36
      %p38 = scmp.eq.s32.totalorder %s37, 0
      %s40 = sadd.s32 %s39, 1
      %s41 = scalar_select %p38, %s39, %s40
      %p44 = pneg %p38
      %p45 = scmp.eq.s32.totalorder %s17, 1
      %p46 = por %p44, %p45
      %p47 = scmp.ne.s32.totalorder %s39, %s42
      %p48 = scmp.eq.s32.totalorder %s17, 0
      %p49 = por %p47, %p48
      %p50 = scmp.ne.s32.totalorder %s39, %s42
      %p51 = scmp.eq.s32.totalorder %s22, 1
      %p52 = por %p50, %p51
      %p53 = scmp.ne.s32.totalorder %s42, %s43
      %p54 = scmp.eq.s32.totalorder %s22, 0
      %p55 = por %p53, %p54
      %p56 = scmp.ne.s32.totalorder %s42, %s43
      %p57 = scmp.eq.s32.totalorder %s23, 1
      %p58 = por %p56, %p57
      %p60 = scmp.ne.s32.totalorder %s43, %s59
      %p61 = scmp.eq.s32.totalorder %s23, 0
      %p62 = por %p60, %p61
      %s63 = ssub.s32 %s24, %s36
      %s64 = ssub.s32 %s25, %s32
      %s65 = sor.u32 %s63, %s64
      %p66 = scmp.eq.s32.totalorder %s65, 0
      %s68 = sadd.s32 %s67, 1
      %s69 = scalar_select %p66, %s67, %s68
      %p72 = pneg %p66
      %p73 = scmp.eq.s32.totalorder %s17, 1
      %p74 = por %p72, %p73
      %p75 = scmp.ne.s32.totalorder %s67, %s70
      %p76 = scmp.eq.s32.totalorder %s17, 0
      %p77 = por %p75, %p76
      %p78 = scmp.ne.s32.totalorder %s67, %s70
      %p79 = scmp.eq.s32.totalorder %s22, 1
      %p80 = por %p78, %p79
      %p81 = scmp.ne.s32.totalorder %s70, %s71
      %p82 = scmp.eq.s32.totalorder %s22, 0
      %p83 = por %p81, %p82
      %p84 = scmp.ne.s32.totalorder %s70, %s71
      %p85 = scmp.eq.s32.totalorder %s23, 1
      %p86 = por %p84, %p85
      %p88 = scmp.ne.s32.totalorder %s71, %s87
      %p89 = scmp.eq.s32.totalorder %s23, 0
      %p90 = por %p88, %p89
      %s91 = ssub.s32 %s24, %s36
      %s92 = ssub.s32 %s25, %s32
      %s93 = sor.u32 %s91, %s92
      %p94 = scmp.eq.s32.totalorder %s93, 0
      %s96 = sadd.s32 %s95, 1
      %s97 = scalar_select %p94, %s95, %s96
      %p100 = pneg %p94
      %p101 = scmp.eq.s32.totalorder %s17, 1
      %p102 = por %p100, %p101
      %p103 = scmp.ne.s32.totalorder %s95, %s98
      %p104 = scmp.eq.s32.totalorder %s17, 0
      %p105 = por %p103, %p104
      %p106 = scmp.ne.s32.totalorder %s95, %s98
      %p107 = scmp.eq.s32.totalorder %s22, 1
      %p108 = por %p106, %p107
      %p109 = scmp.ne.s32.totalorder %s98, %s99
      %p110 = scmp.eq.s32.totalorder %s22, 0
      %p111 = por %p109, %p110
      %p112 = scmp.ne.s32.totalorder %s98, %s99
      %p113 = scmp.eq.s32.totalorder %s23, 1
      %p114 = por %p112, %p113
      %p116 = scmp.ne.s32.totalorder %s99, %s115
      %p117 = scmp.eq.s32.totalorder %s23, 0
      %p118 = por %p116, %p117
      %p119 = scmp.le.s32.totalorder 1, %s17
      %p120 = scmp.lt.s32.totalorder %s17, 3
      %p121 = pnand %p119, %p120
      %p122 = pneg %p121
      // Predicated region
      $region9: #{tpu_custom_call.1} parent=5 // pred_check
        _
      $region10: #{tpu_custom_call.1} parent=5 // pred_check_branch
        %124 = sbr.rel (%p121) target = $region12
      $region11: #{tpu_custom_call.1} parent=5 // pred_region
        %s125 = ssub.s32 %s17, 1
      $region12: #{tpu_custom_call.1} parent=5 // pred_fallthru
        _
      %p126 = scmp.lt.s32.totalorder %s17, 2
      // Predicated region
      $region13: #{tpu_custom_call.1} parent=5 // pred_check
        %p127 = pneg %p126
      $region14: #{tpu_custom_call.1} parent=5 // pred_check_branch
        %129 = sbr.rel (%p127) target = $region16
      $region15: #{tpu_custom_call.1} parent=5 // pred_region
        // Predicated region
        $region17: #{tpu_custom_call.1} parent=15 // pred_check
          %p130 = pneg %p49
        $region18: #{tpu_custom_call.1} parent=15 // pred_check_branch
          %132 = sbr.rel (%p130) target = $region20
        $region19: #{tpu_custom_call.1} parent=15 // pred_region
          %s133 = sand.u32 %s39, 1
          %s134 = scalar_lea.sflag [#allocation3], %s133
          %s135 = sand.u32 %s39, 1
          %s136 = smul.addr %s135, 128
          %s137 = scalar_lea.vmem [#allocation2], %s136
          %s139 = ssub.s32 2048, 2048
          %140 = vsyncadd %s134, %s139
          %s141 = smul.addr %s24, 16
          %s142 = smul.addr %s141, 128
          %s143 = scalar_lea.hbm %s0, %s142
          %s144 = sshll.u32 %s137, 4
          %s145 = int_to_ptr.vmem [resolvable:$true] %s144
          %150 = dma.hbm_to_vmem [thread:$0]  %s143, 2048, %s145, %s134, 128, 128, 8
        $region20: #{tpu_custom_call.1} parent=15 // pred_fallthru
          _
        // Predicated region
        $region21: #{tpu_custom_call.1} parent=15 // pred_check
          %p151 = pneg %p77
        $region22: #{tpu_custom_call.1} parent=15 // pred_check_branch
          %153 = sbr.rel (%p151) target = $region24
        $region23: #{tpu_custom_call.1} parent=15 // pred_region
          %s154 = sand.u32 %s67, 1
          %s155 = scalar_lea.sflag [#allocation6], %s154
          %s156 = sand.u32 %s67, 1
          %s157 = scalar_lea.vmem [#allocation5], %s156
          %s159 = ssub.s32 16, 16
          %160 = vsyncadd %s155, %s159
          %s161 = sadd.s32 %s25, %s24
          %s162 = smul.addr %s161, 16
          %s163 = scalar_lea.hbm %s1, %s162
          %s165 = sshll.u32 %s157, 4
          %s166 = int_to_ptr.vmem [resolvable:$true] %s165
          %168 = dma.hbm_to_vmem [thread:$0]  %s163, 16, %s166, %s155
        $region24: #{tpu_custom_call.1} parent=15 // pred_fallthru
          _
      $region16: #{tpu_custom_call.1} parent=5 // pred_fallthru
        _
      %p169 = scmp.le.s32.totalorder 1, %s17
      %p170 = scmp.lt.s32.totalorder %s17, 3
      %p171 = pnand %p169, %p170
      %p172 = pneg %p171
      // Predicated region
      $region25: #{tpu_custom_call.1} parent=5 // pred_check
        _
      $region26: #{tpu_custom_call.1} parent=5 // pred_check_branch
        %174 = sbr.rel (%p171) target = $region28
      $region27: #{tpu_custom_call.1} parent=5 // pred_region
        %s175 = ssub.s32 %s17, 1
        %s176 = sand.u32 %s42, 1
        %s177 = scalar_lea.sflag [#allocation3], %s176
        %s178 = sand.u32 %s42, 1
        %s179 = smul.addr %s178, 128
        %s180 = scalar_lea.vmem [#allocation2], %s179
        // Predicated region
        $region29: #{tpu_custom_call.1} parent=27 // pred_check
          %p181 = pneg %p55
        $region30: #{tpu_custom_call.1} parent=27 // pred_check_branch
          %183 = sbr.rel (%p181) target = $region32
        $region31: #{tpu_custom_call.1} parent=27 // pred_region
          %184 = dma.done %s177, 2048
        $region32: #{tpu_custom_call.1} parent=27 // pred_fallthru
          _
        %s185 = sand.u32 %s70, 1
        %s186 = scalar_lea.sflag [#allocation6], %s185
        %s187 = sand.u32 %s70, 1
        %s188 = scalar_lea.vmem [#allocation5], %s187
        // Predicated region
        $region33: #{tpu_custom_call.1} parent=27 // pred_check
          %p189 = pneg %p83
        $region34: #{tpu_custom_call.1} parent=27 // pred_check_branch
          %191 = sbr.rel (%p189) target = $region36
        $region35: #{tpu_custom_call.1} parent=27 // pred_region
          %192 = dma.done %s186, 16
        $region36: #{tpu_custom_call.1} parent=27 // pred_fallthru
          _
        %s193 = sand.u32 %s42, 1
        %s194 = scalar_lea.sflag [#allocation3], %s193
        %s195 = sand.u32 %s42, 1
        %s196 = smul.addr %s195, 128
        %s197 = scalar_lea.vmem [#allocation2], %s196
        %p198 = pneg %p55
        %p199 = pneg %p52
        %s200 = sand.u32 %s70, 1
        %s201 = scalar_lea.sflag [#allocation6], %s200
        %s202 = sand.u32 %s70, 1
        %s203 = scalar_lea.vmem [#allocation5], %s202
        %p204 = pneg %p83
        %p205 = pneg %p80
        %p206 = pneg %p111
        %p207 = pneg %p108
        %s208 = sand.u32 %s98, 1
        %s209 = scalar_lea.sflag [#allocation4], %s208
        %s210 = sand.u32 %s98, 1
        %s211 = scalar_lea.vmem [#allocation7], %s210
        %v212 = vld [vmem:[%s188] sm:$0x1]
        %v213 = vld [vmem:[%s180] sm:$0x1]
        %vm214 = vcmp.eq.s32.totalorder %v212, 0
        %215 = vset.pattern.permute.xlu0 0
        %216 = vperm.xlu0 %215, %v213
        %v217 = vpop.permute.xlu0 %216
        %v218 = vsel %vm214, %v217, 0
        %v219 = vld [vmem:[%s180 + $0x1] sm:$0x1]
        %vm220 = vcmp.eq.s32.totalorder %v212, 1
        %221 = vset.pattern.permute.xlu0 0
        %222 = vperm.xlu0 %221, %v219
        %v223 = vpop.permute.xlu0 %222
        %v224 = vsel %vm220, %v223, %v218
        %v225 = vld [vmem:[%s180 + $0x2] sm:$0x1]
        %vm226 = vcmp.eq.s32.totalorder %v212, 2
        %227 = vset.pattern.permute.xlu0 0
        %228 = vperm.xlu0 %227, %v225
        %v229 = vpop.permute.xlu0 %228
        %v230 = vsel %vm226, %v229, %v224
        %v231 = vld [vmem:[%s180 + $0x3] sm:$0x1]
        %vm232 = vcmp.eq.s32.totalorder %v212, 3
        %233 = vset.pattern.permute.xlu0 0
        %234 = vperm.xlu0 %233, %v231
        %v235 = vpop.permute.xlu0 %234
        %v236 = vsel %vm232, %v235, %v230
        %v237 = vld [vmem:[%s180 + $0x4] sm:$0x1]
        %vm238 = vcmp.eq.s32.totalorder %v212, 4
        %239 = vset.pattern.permute.xlu0 0
        %240 = vperm.xlu0 %239, %v237
        %v241 = vpop.permute.xlu0 %240
        %v242 = vsel %vm238, %v241, %v236
        %v243 = vld [vmem:[%s180 + $0x5] sm:$0x1]
        %vm244 = vcmp.eq.s32.totalorder %v212, 5
        %245 = vset.pattern.permute.xlu0 0
        %246 = vperm.xlu0 %245, %v243
        %v247 = vpop.permute.xlu0 %246
        %v248 = vsel %vm244, %v247, %v242
        %v249 = vld [vmem:[%s180 + $0x6] sm:$0x1]
        %vm250 = vcmp.eq.s32.totalorder %v212, 6
        %251 = vset.pattern.permute.xlu0 0
        %252 = vperm.xlu0 %251, %v249
        %v253 = vpop.permute.xlu0 %252
        %v254 = vsel %vm250, %v253, %v248
        %v255 = vld [vmem:[%s180 + $0x7] sm:$0x1]
        %vm256 = vcmp.eq.s32.totalorder %v212, 7
        %257 = vset.pattern.permute.xlu0 0
        %258 = vperm.xlu0 %257, %v255
        %v259 = vpop.permute.xlu0 %258
        %v260 = vsel %vm256, %v259, %v254
        %v261 = vld [vmem:[%s180 + $0x8] sm:$0x1]
        %vm262 = vcmp.eq.s32.totalorder %v212, 8
        %263 = vset.pattern.permute.xlu0 0
        %264 = vperm.xlu0 %263, %v261
        %v265 = vpop.permute.xlu0 %264
        %v266 = vsel %vm262, %v265, %v260
        %v267 = vld [vmem:[%s180 + $0x9] sm:$0x1]
        %vm268 = vcmp.eq.s32.totalorder %v212, 9
        %269 = vset.pattern.permute.xlu0 0
        %270 = vperm.xlu0 %269, %v267
        %v271 = vpop.permute.xlu0 %270
        %v272 = vsel %vm268, %v271, %v266
        %v273 = vld [vmem:[%s180 + $0xa] sm:$0x1]
        %vm274 = vcmp.eq.s32.totalorder %v212, 10
        %275 = vset.pattern.permute.xlu0 0
        %276 = vperm.xlu0 %275, %v273
        %v277 = vpop.permute.xlu0 %276
        %v278 = vsel %vm274, %v277, %v272
        %v279 = vld [vmem:[%s180 + $0xb] sm:$0x1]
        %vm280 = vcmp.eq.s32.totalorder %v212, 11
        %281 = vset.pattern.permute.xlu0 0
        %282 = vperm.xlu0 %281, %v279
        %v283 = vpop.permute.xlu0 %282
        %v284 = vsel %vm280, %v283, %v278
        %v285 = vld [vmem:[%s180 + $0xc] sm:$0x1]
        %vm286 = vcmp.eq.s32.totalorder %v212, 12
        %287 = vset.pattern.permute.xlu0 0
        %288 = vperm.xlu0 %287, %v285
        %v289 = vpop.permute.xlu0 %288
        %v290 = vsel %vm286, %v289, %v284
        %v291 = vld [vmem:[%s180 + $0xd] sm:$0x1]
        %vm292 = vcmp.eq.s32.totalorder %v212, 13
        %293 = vset.pattern.permute.xlu0 0
        %294 = vperm.xlu0 %293, %v291
        %v295 = vpop.permute.xlu0 %294
        %v296 = vsel %vm292, %v295, %v290
        %v297 = vld [vmem:[%s180 + $0xe] sm:$0x1]
        %vm298 = vcmp.eq.s32.totalorder %v212, 14
        %299 = vset.pattern.permute.xlu0 0
        %300 = vperm.xlu0 %299, %v297
        %v301 = vpop.permute.xlu0 %300
        %v302 = vsel %vm298, %v301, %v296
        %v303 = vld [vmem:[%s180 + $0xf] sm:$0x1]
        %vm304 = vcmp.eq.s32.totalorder %v212, 15
        %305 = vset.pattern.permute.xlu0 0
        %306 = vperm.xlu0 %305, %v303
        %v307 = vpop.permute.xlu0 %306
        %v308 = vsel %vm304, %v307, %v302
        %v309 = vld [vmem:[%s180 + $0x10] sm:$0x1]
        %vm310 = vcmp.eq.s32.totalorder %v212, 16
        %311 = vset.pattern.permute.xlu0 0
        %312 = vperm.xlu0 %311, %v309
        %v313 = vpop.permute.xlu0 %312
        %v314 = vsel %vm310, %v313, %v308
        %v315 = vld [vmem:[%s180 + $0x11] sm:$0x1]
        %vm316 = vcmp.eq.s32.totalorder %v212, 17
        %317 = vset.pattern.permute.xlu0 0
        %318 = vperm.xlu0 %317, %v315
        %v319 = vpop.permute.xlu0 %318
        %v320 = vsel %vm316, %v319, %v314
        %v321 = vld [vmem:[%s180 + $0x12] sm:$0x1]
        %vm322 = vcmp.eq.s32.totalorder %v212, 18
        %323 = vset.pattern.permute.xlu0 0
        %324 = vperm.xlu0 %323, %v321
        %v325 = vpop.permute.xlu0 %324
        %v326 = vsel %vm322, %v325, %v320
        %v327 = vld [vmem:[%s180 + $0x13] sm:$0x1]
        %vm328 = vcmp.eq.s32.totalorder %v212, 19
        %329 = vset.pattern.permute.xlu0 0
        %330 = vperm.xlu0 %329, %v327
        %v331 = vpop.permute.xlu0 %330
        %v332 = vsel %vm328, %v331, %v326
        %v333 = vld [vmem:[%s180 + $0x14] sm:$0x1]
        %vm334 = vcmp.eq.s32.totalorder %v212, 20
        %335 = vset.pattern.permute.xlu0 0
        %336 = vperm.xlu0 %335, %v333
        %v337 = vpop.permute.xlu0 %336
        %v338 = vsel %vm334, %v337, %v332
        %v339 = vld [vmem:[%s180 + $0x15] sm:$0x1]
        %vm340 = vcmp.eq.s32.totalorder %v212, 21
        %341 = vset.pattern.permute.xlu0 0
        %342 = vperm.xlu0 %341, %v339
        %v343 = vpop.permute.xlu0 %342
        %v344 = vsel %vm340, %v343, %v338
        %v345 = vld [vmem:[%s180 + $0x16] sm:$0x1]
        %vm346 = vcmp.eq.s32.totalorder %v212, 22
        %347 = vset.pattern.permute.xlu0 0
        %348 = vperm.xlu0 %347, %v345
        %v349 = vpop.permute.xlu0 %348
        %v350 = vsel %vm346, %v349, %v344
        %v351 = vld [vmem:[%s180 + $0x17] sm:$0x1]
        %vm352 = vcmp.eq.s32.totalorder %v212, 23
        %353 = vset.pattern.permute.xlu0 0
        %354 = vperm.xlu0 %353, %v351
        %v355 = vpop.permute.xlu0 %354
        %v356 = vsel %vm352, %v355, %v350
        %v357 = vld [vmem:[%s180 + $0x18] sm:$0x1]
        %vm358 = vcmp.eq.s32.totalorder %v212, 24
        %359 = vset.pattern.permute.xlu0 0
        %360 = vperm.xlu0 %359, %v357
        %v361 = vpop.permute.xlu0 %360
        %v362 = vsel %vm358, %v361, %v356
        %v363 = vld [vmem:[%s180 + $0x19] sm:$0x1]
        %vm364 = vcmp.eq.s32.totalorder %v212, 25
        %365 = vset.pattern.permute.xlu0 0
        %366 = vperm.xlu0 %365, %v363
        %v367 = vpop.permute.xlu0 %366
        %v368 = vsel %vm364, %v367, %v362
        %v369 = vld [vmem:[%s180 + $0x1a] sm:$0x1]
        %vm370 = vcmp.eq.s32.totalorder %v212, 26
        %371 = vset.pattern.permute.xlu0 0
        %372 = vperm.xlu0 %371, %v369
        %v373 = vpop.permute.xlu0 %372
        %v374 = vsel %vm370, %v373, %v368
        %v375 = vld [vmem:[%s180 + $0x1b] sm:$0x1]
        %vm376 = vcmp.eq.s32.totalorder %v212, 27
        %377 = vset.pattern.permute.xlu0 0
        %378 = vperm.xlu0 %377, %v375
        %v379 = vpop.permute.xlu0 %378
        %v380 = vsel %vm376, %v379, %v374
        %v381 = vld [vmem:[%s180 + $0x1c] sm:$0x1]
        %vm382 = vcmp.eq.s32.totalorder %v212, 28
        %383 = vset.pattern.permute.xlu0 0
        %384 = vperm.xlu0 %383, %v381
        %v385 = vpop.permute.xlu0 %384
        %v386 = vsel %vm382, %v385, %v380
        %v387 = vld [vmem:[%s180 + $0x1d] sm:$0x1]
        %vm388 = vcmp.eq.s32.totalorder %v212, 29
        %389 = vset.pattern.permute.xlu0 0
        %390 = vperm.xlu0 %389, %v387
        %v391 = vpop.permute.xlu0 %390
        %v392 = vsel %vm388, %v391, %v386
        %v393 = vld [vmem:[%s180 + $0x1e] sm:$0x1]
        %vm394 = vcmp.eq.s32.totalorder %v212, 30
        %395 = vset.pattern.permute.xlu0 0
        %396 = vperm.xlu0 %395, %v393
        %v397 = vpop.permute.xlu0 %396
        %v398 = vsel %vm394, %v397, %v392
        %v399 = vld [vmem:[%s180 + $0x1f] sm:$0x1]
        %vm400 = vcmp.eq.s32.totalorder %v212, 31
        %401 = vset.pattern.permute.xlu0 0
        %402 = vperm.xlu0 %401, %v399
        %v403 = vpop.permute.xlu0 %402
        %v404 = vsel %vm400, %v403, %v398
        %v405 = vld [vmem:[%s180 + $0x20] sm:$0x1]
        %vm406 = vcmp.eq.s32.totalorder %v212, 32
        %407 = vset.pattern.permute.xlu0 0
        %408 = vperm.xlu0 %407, %v405
        %v409 = vpop.permute.xlu0 %408
        %v410 = vsel %vm406, %v409, %v404
        %v411 = vld [vmem:[%s180 + $0x21] sm:$0x1]
        %vm412 = vcmp.eq.s32.totalorder %v212, 33
        %413 = vset.pattern.permute.xlu0 0
        %414 = vperm.xlu0 %413, %v411
        %v415 = vpop.permute.xlu0 %414
        %v416 = vsel %vm412, %v415, %v410
        %v417 = vld [vmem:[%s180 + $0x22] sm:$0x1]
        %vm418 = vcmp.eq.s32.totalorder %v212, 34
        %419 = vset.pattern.permute.xlu0 0
        %420 = vperm.xlu0 %419, %v417
        %v421 = vpop.permute.xlu0 %420
        %v422 = vsel %vm418, %v421, %v416
        %v423 = vld [vmem:[%s180 + $0x23] sm:$0x1]
        %vm424 = vcmp.eq.s32.totalorder %v212, 35
        %425 = vset.pattern.permute.xlu0 0
        %426 = vperm.xlu0 %425, %v423
        %v427 = vpop.permute.xlu0 %426
        %v428 = vsel %vm424, %v427, %v422
        %v429 = vld [vmem:[%s180 + $0x24] sm:$0x1]
        %vm430 = vcmp.eq.s32.totalorder %v212, 36
        %431 = vset.pattern.permute.xlu0 0
        %432 = vperm.xlu0 %431, %v429
        %v433 = vpop.permute.xlu0 %432
        %v434 = vsel %vm430, %v433, %v428
        %v435 = vld [vmem:[%s180 + $0x25] sm:$0x1]
        %vm436 = vcmp.eq.s32.totalorder %v212, 37
        %437 = vset.pattern.permute.xlu0 0
        %438 = vperm.xlu0 %437, %v435
        %v439 = vpop.permute.xlu0 %438
        %v440 = vsel %vm436, %v439, %v434
        %v441 = vld [vmem:[%s180 + $0x26] sm:$0x1]
        %vm442 = vcmp.eq.s32.totalorder %v212, 38
        %443 = vset.pattern.permute.xlu0 0
        %444 = vperm.xlu0 %443, %v441
        %v445 = vpop.permute.xlu0 %444
        %v446 = vsel %vm442, %v445, %v440
        %v447 = vld [vmem:[%s180 + $0x27] sm:$0x1]
        %vm448 = vcmp.eq.s32.totalorder %v212, 39
        %449 = vset.pattern.permute.xlu0 0
        %450 = vperm.xlu0 %449, %v447
        %v451 = vpop.permute.xlu0 %450
        %v452 = vsel %vm448, %v451, %v446
        %v453 = vld [vmem:[%s180 + $0x28] sm:$0x1]
        %vm454 = vcmp.eq.s32.totalorder %v212, 40
        %455 = vset.pattern.permute.xlu0 0
        %456 = vperm.xlu0 %455, %v453
        %v457 = vpop.permute.xlu0 %456
        %v458 = vsel %vm454, %v457, %v452
        %v459 = vld [vmem:[%s180 + $0x29] sm:$0x1]
        %vm460 = vcmp.eq.s32.totalorder %v212, 41
        %461 = vset.pattern.permute.xlu0 0
        %462 = vperm.xlu0 %461, %v459
        %v463 = vpop.permute.xlu0 %462
        %v464 = vsel %vm460, %v463, %v458
        %v465 = vld [vmem:[%s180 + $0x2a] sm:$0x1]
        %vm466 = vcmp.eq.s32.totalorder %v212, 42
        %467 = vset.pattern.permute.xlu0 0
        %468 = vperm.xlu0 %467, %v465
        %v469 = vpop.permute.xlu0 %468
        %v470 = vsel %vm466, %v469, %v464
        %v471 = vld [vmem:[%s180 + $0x2b] sm:$0x1]
        %vm472 = vcmp.eq.s32.totalorder %v212, 43
        %473 = vset.pattern.permute.xlu0 0
        %474 = vperm.xlu0 %473, %v471
        %v475 = vpop.permute.xlu0 %474
        %v476 = vsel %vm472, %v475, %v470
        %v477 = vld [vmem:[%s180 + $0x2c] sm:$0x1]
        %vm478 = vcmp.eq.s32.totalorder %v212, 44
        %479 = vset.pattern.permute.xlu0 0
        %480 = vperm.xlu0 %479, %v477
        %v481 = vpop.permute.xlu0 %480
        %v482 = vsel %vm478, %v481, %v476
        %v483 = vld [vmem:[%s180 + $0x2d] sm:$0x1]
        %vm484 = vcmp.eq.s32.totalorder %v212, 45
        %485 = vset.pattern.permute.xlu0 0
        %486 = vperm.xlu0 %485, %v483
        %v487 = vpop.permute.xlu0 %486
        %v488 = vsel %vm484, %v487, %v482
        %v489 = vld [vmem:[%s180 + $0x2e] sm:$0x1]
        %vm490 = vcmp.eq.s32.totalorder %v212, 46
        %491 = vset.pattern.permute.xlu0 0
        %492 = vperm.xlu0 %491, %v489
        %v493 = vpop.permute.xlu0 %492
        %v494 = vsel %vm490, %v493, %v488
        %v495 = vld [vmem:[%s180 + $0x2f] sm:$0x1]
        %vm496 = vcmp.eq.s32.totalorder %v212, 47
        %497 = vset.pattern.permute.xlu0 0
        %498 = vperm.xlu0 %497, %v495
        %v499 = vpop.permute.xlu0 %498
        %v500 = vsel %vm496, %v499, %v494
        %v501 = vld [vmem:[%s180 + $0x30] sm:$0x1]
        %vm502 = vcmp.eq.s32.totalorder %v212, 48
        %503 = vset.pattern.permute.xlu0 0
        %504 = vperm.xlu0 %503, %v501
        %v505 = vpop.permute.xlu0 %504
        %v506 = vsel %vm502, %v505, %v500
        %v507 = vld [vmem:[%s180 + $0x31] sm:$0x1]
        %vm508 = vcmp.eq.s32.totalorder %v212, 49
        %509 = vset.pattern.permute.xlu0 0
        %510 = vperm.xlu0 %509, %v507
        %v511 = vpop.permute.xlu0 %510
        %v512 = vsel %vm508, %v511, %v506
        %v513 = vld [vmem:[%s180 + $0x32] sm:$0x1]
        %vm514 = vcmp.eq.s32.totalorder %v212, 50
        %515 = vset.pattern.permute.xlu0 0
        %516 = vperm.xlu0 %515, %v513
        %v517 = vpop.permute.xlu0 %516
        %v518 = vsel %vm514, %v517, %v512
        %v519 = vld [vmem:[%s180 + $0x33] sm:$0x1]
        %vm520 = vcmp.eq.s32.totalorder %v212, 51
        %521 = vset.pattern.permute.xlu0 0
        %522 = vperm.xlu0 %521, %v519
        %v523 = vpop.permute.xlu0 %522
        %v524 = vsel %vm520, %v523, %v518
        %v525 = vld [vmem:[%s180 + $0x34] sm:$0x1]
        %vm526 = vcmp.eq.s32.totalorder %v212, 52
        %527 = vset.pattern.permute.xlu0 0
        %528 = vperm.xlu0 %527, %v525
        %v529 = vpop.permute.xlu0 %528
        %v530 = vsel %vm526, %v529, %v524
        %v531 = vld [vmem:[%s180 + $0x35] sm:$0x1]
        %vm532 = vcmp.eq.s32.totalorder %v212, 53
        %533 = vset.pattern.permute.xlu0 0
        %534 = vperm.xlu0 %533, %v531
        %v535 = vpop.permute.xlu0 %534
        %v536 = vsel %vm532, %v535, %v530
        %v537 = vld [vmem:[%s180 + $0x36] sm:$0x1]
        %vm538 = vcmp.eq.s32.totalorder %v212, 54
        %539 = vset.pattern.permute.xlu0 0
        %540 = vperm.xlu0 %539, %v537
        %v541 = vpop.permute.xlu0 %540
        %v542 = vsel %vm538, %v541, %v536
        %v543 = vld [vmem:[%s180 + $0x37] sm:$0x1]
        %vm544 = vcmp.eq.s32.totalorder %v212, 55
        %545 = vset.pattern.permute.xlu0 0
        %546 = vperm.xlu0 %545, %v543
        %v547 = vpop.permute.xlu0 %546
        %v548 = vsel %vm544, %v547, %v542
        %v549 = vld [vmem:[%s180 + $0x38] sm:$0x1]
        %vm550 = vcmp.eq.s32.totalorder %v212, 56
        %551 = vset.pattern.permute.xlu0 0
        %552 = vperm.xlu0 %551, %v549
        %v553 = vpop.permute.xlu0 %552
        %v554 = vsel %vm550, %v553, %v548
        %v555 = vld [vmem:[%s180 + $0x39] sm:$0x1]
        %vm556 = vcmp.eq.s32.totalorder %v212, 57
        %557 = vset.pattern.permute.xlu0 0
        %558 = vperm.xlu0 %557, %v555
        %v559 = vpop.permute.xlu0 %558
        %v560 = vsel %vm556, %v559, %v554
        %v561 = vld [vmem:[%s180 + $0x3a] sm:$0x1]
        %vm562 = vcmp.eq.s32.totalorder %v212, 58
        %563 = vset.pattern.permute.xlu0 0
        %564 = vperm.xlu0 %563, %v561
        %v565 = vpop.permute.xlu0 %564
        %v566 = vsel %vm562, %v565, %v560
        %v567 = vld [vmem:[%s180 + $0x3b] sm:$0x1]
        %vm568 = vcmp.eq.s32.totalorder %v212, 59
        %569 = vset.pattern.permute.xlu0 0
        %570 = vperm.xlu0 %569, %v567
        %v571 = vpop.permute.xlu0 %570
        %v572 = vsel %vm568, %v571, %v566
        %v573 = vld [vmem:[%s180 + $0x3c] sm:$0x1]
        %vm574 = vcmp.eq.s32.totalorder %v212, 60
        %575 = vset.pattern.permute.xlu0 0
        %576 = vperm.xlu0 %575, %v573
        %v577 = vpop.permute.xlu0 %576
        %v578 = vsel %vm574, %v577, %v572
        %v579 = vld [vmem:[%s180 + $0x3d] sm:$0x1]
        %vm580 = vcmp.eq.s32.totalorder %v212, 61
        %581 = vset.pattern.permute.xlu0 0
        %582 = vperm.xlu0 %581, %v579
        %v583 = vpop.permute.xlu0 %582
        %v584 = vsel %vm580, %v583, %v578
        %v585 = vld [vmem:[%s180 + $0x3e] sm:$0x1]
        %vm586 = vcmp.eq.s32.totalorder %v212, 62
        %587 = vset.pattern.permute.xlu0 0
        %588 = vperm.xlu0 %587, %v585
        %v589 = vpop.permute.xlu0 %588
        %v590 = vsel %vm586, %v589, %v584
        %v591 = vld [vmem:[%s180 + $0x3f] sm:$0x1]
        %vm592 = vcmp.eq.s32.totalorder %v212, 63
        %593 = vset.pattern.permute.xlu0 0
        %594 = vperm.xlu0 %593, %v591
        %v595 = vpop.permute.xlu0 %594
        %v596 = vsel %vm592, %v595, %v590
        %v597 = vld [vmem:[%s180 + $0x40] sm:$0x1]
        %vm598 = vcmp.eq.s32.totalorder %v212, 64
        %599 = vset.pattern.permute.xlu0 0
        %600 = vperm.xlu0 %599, %v597
        %v601 = vpop.permute.xlu0 %600
        %v602 = vsel %vm598, %v601, %v596
        %v603 = vld [vmem:[%s180 + $0x41] sm:$0x1]
        %vm604 = vcmp.eq.s32.totalorder %v212, 65
        %605 = vset.pattern.permute.xlu0 0
        %606 = vperm.xlu0 %605, %v603
        %v607 = vpop.permute.xlu0 %606
        %v608 = vsel %vm604, %v607, %v602
        %v609 = vld [vmem:[%s180 + $0x42] sm:$0x1]
        %vm610 = vcmp.eq.s32.totalorder %v212, 66
        %611 = vset.pattern.permute.xlu0 0
        %612 = vperm.xlu0 %611, %v609
        %v613 = vpop.permute.xlu0 %612
        %v614 = vsel %vm610, %v613, %v608
        %v615 = vld [vmem:[%s180 + $0x43] sm:$0x1]
        %vm616 = vcmp.eq.s32.totalorder %v212, 67
        %617 = vset.pattern.permute.xlu0 0
        %618 = vperm.xlu0 %617, %v615
        %v619 = vpop.permute.xlu0 %618
        %v620 = vsel %vm616, %v619, %v614
        %v621 = vld [vmem:[%s180 + $0x44] sm:$0x1]
        %vm622 = vcmp.eq.s32.totalorder %v212, 68
        %623 = vset.pattern.permute.xlu0 0
        %624 = vperm.xlu0 %623, %v621
        %v625 = vpop.permute.xlu0 %624
        %v626 = vsel %vm622, %v625, %v620
        %v627 = vld [vmem:[%s180 + $0x45] sm:$0x1]
        %vm628 = vcmp.eq.s32.totalorder %v212, 69
        %629 = vset.pattern.permute.xlu0 0
        %630 = vperm.xlu0 %629, %v627
        %v631 = vpop.permute.xlu0 %630
        %v632 = vsel %vm628, %v631, %v626
        %v633 = vld [vmem:[%s180 + $0x46] sm:$0x1]
        %vm634 = vcmp.eq.s32.totalorder %v212, 70
        %635 = vset.pattern.permute.xlu0 0
        %636 = vperm.xlu0 %635, %v633
        %v637 = vpop.permute.xlu0 %636
        %v638 = vsel %vm634, %v637, %v632
        %v639 = vld [vmem:[%s180 + $0x47] sm:$0x1]
        %vm640 = vcmp.eq.s32.totalorder %v212, 71
        %641 = vset.pattern.permute.xlu0 0
        %642 = vperm.xlu0 %641, %v639
        %v643 = vpop.permute.xlu0 %642
        %v644 = vsel %vm640, %v643, %v638
        %v645 = vld [vmem:[%s180 + $0x48] sm:$0x1]
        %vm646 = vcmp.eq.s32.totalorder %v212, 72
        %647 = vset.pattern.permute.xlu0 0
        %648 = vperm.xlu0 %647, %v645
        %v649 = vpop.permute.xlu0 %648
        %v650 = vsel %vm646, %v649, %v644
        %v651 = vld [vmem:[%s180 + $0x49] sm:$0x1]
        %vm652 = vcmp.eq.s32.totalorder %v212, 73
        %653 = vset.pattern.permute.xlu0 0
        %654 = vperm.xlu0 %653, %v651
        %v655 = vpop.permute.xlu0 %654
        %v656 = vsel %vm652, %v655, %v650
        %v657 = vld [vmem:[%s180 + $0x4a] sm:$0x1]
        %vm658 = vcmp.eq.s32.totalorder %v212, 74
        %659 = vset.pattern.permute.xlu0 0
        %660 = vperm.xlu0 %659, %v657
        %v661 = vpop.permute.xlu0 %660
        %v662 = vsel %vm658, %v661, %v656
        %v663 = vld [vmem:[%s180 + $0x4b] sm:$0x1]
        %vm664 = vcmp.eq.s32.totalorder %v212, 75
        %665 = vset.pattern.permute.xlu0 0
        %666 = vperm.xlu0 %665, %v663
        %v667 = vpop.permute.xlu0 %666
        %v668 = vsel %vm664, %v667, %v662
        %v669 = vld [vmem:[%s180 + $0x4c] sm:$0x1]
        %vm670 = vcmp.eq.s32.totalorder %v212, 76
        %671 = vset.pattern.permute.xlu0 0
        %672 = vperm.xlu0 %671, %v669
        %v673 = vpop.permute.xlu0 %672
        %v674 = vsel %vm670, %v673, %v668
        %v675 = vld [vmem:[%s180 + $0x4d] sm:$0x1]
        %vm676 = vcmp.eq.s32.totalorder %v212, 77
        %677 = vset.pattern.permute.xlu0 0
        %678 = vperm.xlu0 %677, %v675
        %v679 = vpop.permute.xlu0 %678
        %v680 = vsel %vm676, %v679, %v674
        %v681 = vld [vmem:[%s180 + $0x4e] sm:$0x1]
        %vm682 = vcmp.eq.s32.totalorder %v212, 78
        %683 = vset.pattern.permute.xlu0 0
        %684 = vperm.xlu0 %683, %v681
        %v685 = vpop.permute.xlu0 %684
        %v686 = vsel %vm682, %v685, %v680
        %v687 = vld [vmem:[%s180 + $0x4f] sm:$0x1]
        %vm688 = vcmp.eq.s32.totalorder %v212, 79
        %689 = vset.pattern.permute.xlu0 0
        %690 = vperm.xlu0 %689, %v687
        %v691 = vpop.permute.xlu0 %690
        %v692 = vsel %vm688, %v691, %v686
        %v693 = vld [vmem:[%s180 + $0x50] sm:$0x1]
        %vm694 = vcmp.eq.s32.totalorder %v212, 80
        %695 = vset.pattern.permute.xlu0 0
        %696 = vperm.xlu0 %695, %v693
        %v697 = vpop.permute.xlu0 %696
        %v698 = vsel %vm694, %v697, %v692
        %v699 = vld [vmem:[%s180 + $0x51] sm:$0x1]
        %vm700 = vcmp.eq.s32.totalorder %v212, 81
        %701 = vset.pattern.permute.xlu0 0
        %702 = vperm.xlu0 %701, %v699
        %v703 = vpop.permute.xlu0 %702
        %v704 = vsel %vm700, %v703, %v698
        %v705 = vld [vmem:[%s180 + $0x52] sm:$0x1]
        %vm706 = vcmp.eq.s32.totalorder %v212, 82
        %707 = vset.pattern.permute.xlu0 0
        %708 = vperm.xlu0 %707, %v705
        %v709 = vpop.permute.xlu0 %708
        %v710 = vsel %vm706, %v709, %v704
        %v711 = vld [vmem:[%s180 + $0x53] sm:$0x1]
        %vm712 = vcmp.eq.s32.totalorder %v212, 83
        %713 = vset.pattern.permute.xlu0 0
        %714 = vperm.xlu0 %713, %v711
        %v715 = vpop.permute.xlu0 %714
        %v716 = vsel %vm712, %v715, %v710
        %v717 = vld [vmem:[%s180 + $0x54] sm:$0x1]
        %vm718 = vcmp.eq.s32.totalorder %v212, 84
        %719 = vset.pattern.permute.xlu0 0
        %720 = vperm.xlu0 %719, %v717
        %v721 = vpop.permute.xlu0 %720
        %v722 = vsel %vm718, %v721, %v716
        %v723 = vld [vmem:[%s180 + $0x55] sm:$0x1]
        %vm724 = vcmp.eq.s32.totalorder %v212, 85
        %725 = vset.pattern.permute.xlu0 0
        %726 = vperm.xlu0 %725, %v723
        %v727 = vpop.permute.xlu0 %726
        %v728 = vsel %vm724, %v727, %v722
        %v729 = vld [vmem:[%s180 + $0x56] sm:$0x1]
        %vm730 = vcmp.eq.s32.totalorder %v212, 86
        %731 = vset.pattern.permute.xlu0 0
        %732 = vperm.xlu0 %731, %v729
        %v733 = vpop.permute.xlu0 %732
        %v734 = vsel %vm730, %v733, %v728
        %v735 = vld [vmem:[%s180 + $0x57] sm:$0x1]
        %vm736 = vcmp.eq.s32.totalorder %v212, 87
        %737 = vset.pattern.permute.xlu0 0
        %738 = vperm.xlu0 %737, %v735
        %v739 = vpop.permute.xlu0 %738
        %v740 = vsel %vm736, %v739, %v734
        %v741 = vld [vmem:[%s180 + $0x58] sm:$0x1]
        %vm742 = vcmp.eq.s32.totalorder %v212, 88
        %743 = vset.pattern.permute.xlu0 0
        %744 = vperm.xlu0 %743, %v741
        %v745 = vpop.permute.xlu0 %744
        %v746 = vsel %vm742, %v745, %v740
        %v747 = vld [vmem:[%s180 + $0x59] sm:$0x1]
        %vm748 = vcmp.eq.s32.totalorder %v212, 89
        %749 = vset.pattern.permute.xlu0 0
        %750 = vperm.xlu0 %749, %v747
        %v751 = vpop.permute.xlu0 %750
        %v752 = vsel %vm748, %v751, %v746
        %v753 = vld [vmem:[%s180 + $0x5a] sm:$0x1]
        %vm754 = vcmp.eq.s32.totalorder %v212, 90
        %755 = vset.pattern.permute.xlu0 0
        %756 = vperm.xlu0 %755, %v753
        %v757 = vpop.permute.xlu0 %756
        %v758 = vsel %vm754, %v757, %v752
        %v759 = vld [vmem:[%s180 + $0x5b] sm:$0x1]
        %vm760 = vcmp.eq.s32.totalorder %v212, 91
        %761 = vset.pattern.permute.xlu0 0
        %762 = vperm.xlu0 %761, %v759
        %v763 = vpop.permute.xlu0 %762
        %v764 = vsel %vm760, %v763, %v758
        %v765 = vld [vmem:[%s180 + $0x5c] sm:$0x1]
        %vm766 = vcmp.eq.s32.totalorder %v212, 92
        %767 = vset.pattern.permute.xlu0 0
        %768 = vperm.xlu0 %767, %v765
        %v769 = vpop.permute.xlu0 %768
        %v770 = vsel %vm766, %v769, %v764
        %v771 = vld [vmem:[%s180 + $0x5d] sm:$0x1]
        %vm772 = vcmp.eq.s32.totalorder %v212, 93
        %773 = vset.pattern.permute.xlu0 0
        %774 = vperm.xlu0 %773, %v771
        %v775 = vpop.permute.xlu0 %774
        %v776 = vsel %vm772, %v775, %v770
        %v777 = vld [vmem:[%s180 + $0x5e] sm:$0x1]
        %vm778 = vcmp.eq.s32.totalorder %v212, 94
        %779 = vset.pattern.permute.xlu0 0
        %780 = vperm.xlu0 %779, %v777
        %v781 = vpop.permute.xlu0 %780
        %v782 = vsel %vm778, %v781, %v776
        %v783 = vld [vmem:[%s180 + $0x5f] sm:$0x1]
        %vm784 = vcmp.eq.s32.totalorder %v212, 95
        %785 = vset.pattern.permute.xlu0 0
        %786 = vperm.xlu0 %785, %v783
        %v787 = vpop.permute.xlu0 %786
        %v788 = vsel %vm784, %v787, %v782
        %v789 = vld [vmem:[%s180 + $0x60] sm:$0x1]
        %vm790 = vcmp.eq.s32.totalorder %v212, 96
        %791 = vset.pattern.permute.xlu0 0
        %792 = vperm.xlu0 %791, %v789
        %v793 = vpop.permute.xlu0 %792
        %v794 = vsel %vm790, %v793, %v788
        %v795 = vld [vmem:[%s180 + $0x61] sm:$0x1]
        %vm796 = vcmp.eq.s32.totalorder %v212, 97
        %797 = vset.pattern.permute.xlu0 0
        %798 = vperm.xlu0 %797, %v795
        %v799 = vpop.permute.xlu0 %798
        %v800 = vsel %vm796, %v799, %v794
        %v801 = vld [vmem:[%s180 + $0x62] sm:$0x1]
        %vm802 = vcmp.eq.s32.totalorder %v212, 98
        %803 = vset.pattern.permute.xlu0 0
        %804 = vperm.xlu0 %803, %v801
        %v805 = vpop.permute.xlu0 %804
        %v806 = vsel %vm802, %v805, %v800
        %v807 = vld [vmem:[%s180 + $0x63] sm:$0x1]
        %vm808 = vcmp.eq.s32.totalorder %v212, 99
        %809 = vset.pattern.permute.xlu0 0
        %810 = vperm.xlu0 %809, %v807
        %v811 = vpop.permute.xlu0 %810
        %v812 = vsel %vm808, %v811, %v806
        %v813 = vld [vmem:[%s180 + $0x64] sm:$0x1]
        %vm814 = vcmp.eq.s32.totalorder %v212, 100
        %815 = vset.pattern.permute.xlu0 0
        %816 = vperm.xlu0 %815, %v813
        %v817 = vpop.permute.xlu0 %816
        %v818 = vsel %vm814, %v817, %v812
        %v819 = vld [vmem:[%s180 + $0x65] sm:$0x1]
        %vm820 = vcmp.eq.s32.totalorder %v212, 101
        %821 = vset.pattern.permute.xlu0 0
        %822 = vperm.xlu0 %821, %v819
        %v823 = vpop.permute.xlu0 %822
        %v824 = vsel %vm820, %v823, %v818
        %v825 = vld [vmem:[%s180 + $0x66] sm:$0x1]
        %vm826 = vcmp.eq.s32.totalorder %v212, 102
        %827 = vset.pattern.permute.xlu0 0
        %828 = vperm.xlu0 %827, %v825
        %v829 = vpop.permute.xlu0 %828
        %v830 = vsel %vm826, %v829, %v824
        %v831 = vld [vmem:[%s180 + $0x67] sm:$0x1]
        %vm832 = vcmp.eq.s32.totalorder %v212, 103
        %833 = vset.pattern.permute.xlu0 0
        %834 = vperm.xlu0 %833, %v831
        %v835 = vpop.permute.xlu0 %834
        %v836 = vsel %vm832, %v835, %v830
        %v837 = vld [vmem:[%s180 + $0x68] sm:$0x1]
        %vm838 = vcmp.eq.s32.totalorder %v212, 104
        %839 = vset.pattern.permute.xlu0 0
        %840 = vperm.xlu0 %839, %v837
        %v841 = vpop.permute.xlu0 %840
        %v842 = vsel %vm838, %v841, %v836
        %v843 = vld [vmem:[%s180 + $0x69] sm:$0x1]
        %vm844 = vcmp.eq.s32.totalorder %v212, 105
        %845 = vset.pattern.permute.xlu0 0
        %846 = vperm.xlu0 %845, %v843
        %v847 = vpop.permute.xlu0 %846
        %v848 = vsel %vm844, %v847, %v842
        %v849 = vld [vmem:[%s180 + $0x6a] sm:$0x1]
        %vm850 = vcmp.eq.s32.totalorder %v212, 106
        %851 = vset.pattern.permute.xlu0 0
        %852 = vperm.xlu0 %851, %v849
        %v853 = vpop.permute.xlu0 %852
        %v854 = vsel %vm850, %v853, %v848
        %v855 = vld [vmem:[%s180 + $0x6b] sm:$0x1]
        %vm856 = vcmp.eq.s32.totalorder %v212, 107
        %857 = vset.pattern.permute.xlu0 0
        %858 = vperm.xlu0 %857, %v855
        %v859 = vpop.permute.xlu0 %858
        %v860 = vsel %vm856, %v859, %v854
        %v861 = vld [vmem:[%s180 + $0x6c] sm:$0x1]
        %vm862 = vcmp.eq.s32.totalorder %v212, 108
        %863 = vset.pattern.permute.xlu0 0
        %864 = vperm.xlu0 %863, %v861
        %v865 = vpop.permute.xlu0 %864
        %v866 = vsel %vm862, %v865, %v860
        %v867 = vld [vmem:[%s180 + $0x6d] sm:$0x1]
        %vm868 = vcmp.eq.s32.totalorder %v212, 109
        %869 = vset.pattern.permute.xlu0 0
        %870 = vperm.xlu0 %869, %v867
        %v871 = vpop.permute.xlu0 %870
        %v872 = vsel %vm868, %v871, %v866
        %v873 = vld [vmem:[%s180 + $0x6e] sm:$0x1]
        %vm874 = vcmp.eq.s32.totalorder %v212, 110
        %875 = vset.pattern.permute.xlu0 0
        %876 = vperm.xlu0 %875, %v873
        %v877 = vpop.permute.xlu0 %876
        %v878 = vsel %vm874, %v877, %v872
        %v879 = vld [vmem:[%s180 + $0x6f] sm:$0x1]
        %vm880 = vcmp.eq.s32.totalorder %v212, 111
        %881 = vset.pattern.permute.xlu0 0
        %882 = vperm.xlu0 %881, %v879
        %v883 = vpop.permute.xlu0 %882
        %v884 = vsel %vm880, %v883, %v878
        %v885 = vld [vmem:[%s180 + $0x70] sm:$0x1]
        %vm886 = vcmp.eq.s32.totalorder %v212, 112
        %887 = vset.pattern.permute.xlu0 0
        %888 = vperm.xlu0 %887, %v885
        %v889 = vpop.permute.xlu0 %888
        %v890 = vsel %vm886, %v889, %v884
        %v891 = vld [vmem:[%s180 + $0x71] sm:$0x1]
        %vm892 = vcmp.eq.s32.totalorder %v212, 113
        %893 = vset.pattern.permute.xlu0 0
        %894 = vperm.xlu0 %893, %v891
        %v895 = vpop.permute.xlu0 %894
        %v896 = vsel %vm892, %v895, %v890
        %v897 = vld [vmem:[%s180 + $0x72] sm:$0x1]
        %vm898 = vcmp.eq.s32.totalorder %v212, 114
        %899 = vset.pattern.permute.xlu0 0
        %900 = vperm.xlu0 %899, %v897
        %v901 = vpop.permute.xlu0 %900
        %v902 = vsel %vm898, %v901, %v896
        %v903 = vld [vmem:[%s180 + $0x73] sm:$0x1]
        %vm904 = vcmp.eq.s32.totalorder %v212, 115
        %905 = vset.pattern.permute.xlu0 0
        %906 = vperm.xlu0 %905, %v903
        %v907 = vpop.permute.xlu0 %906
        %v908 = vsel %vm904, %v907, %v902
        %v909 = vld [vmem:[%s180 + $0x74] sm:$0x1]
        %vm910 = vcmp.eq.s32.totalorder %v212, 116
        %911 = vset.pattern.permute.xlu0 0
        %912 = vperm.xlu0 %911, %v909
        %v913 = vpop.permute.xlu0 %912
        %v914 = vsel %vm910, %v913, %v908
        %v915 = vld [vmem:[%s180 + $0x75] sm:$0x1]
        %vm916 = vcmp.eq.s32.totalorder %v212, 117
        %917 = vset.pattern.permute.xlu0 0
        %918 = vperm.xlu0 %917, %v915
        %v919 = vpop.permute.xlu0 %918
        %v920 = vsel %vm916, %v919, %v914
        %v921 = vld [vmem:[%s180 + $0x76] sm:$0x1]
        %vm922 = vcmp.eq.s32.totalorder %v212, 118
        %923 = vset.pattern.permute.xlu0 0
        %924 = vperm.xlu0 %923, %v921
        %v925 = vpop.permute.xlu0 %924
        %v926 = vsel %vm922, %v925, %v920
        %v927 = vld [vmem:[%s180 + $0x77] sm:$0x1]
        %vm928 = vcmp.eq.s32.totalorder %v212, 119
        %929 = vset.pattern.permute.xlu0 0
        %930 = vperm.xlu0 %929, %v927
        %v931 = vpop.permute.xlu0 %930
        %v932 = vsel %vm928, %v931, %v926
        %v933 = vld [vmem:[%s180 + $0x78] sm:$0x1]
        %vm934 = vcmp.eq.s32.totalorder %v212, 120
        %935 = vset.pattern.permute.xlu0 0
        %936 = vperm.xlu0 %935, %v933
        %v937 = vpop.permute.xlu0 %936
        %v938 = vsel %vm934, %v937, %v932
        %v939 = vld [vmem:[%s180 + $0x79] sm:$0x1]
        %vm940 = vcmp.eq.s32.totalorder %v212, 121
        %941 = vset.pattern.permute.xlu0 0
        %942 = vperm.xlu0 %941, %v939
        %v943 = vpop.permute.xlu0 %942
        %v944 = vsel %vm940, %v943, %v938
        %v945 = vld [vmem:[%s180 + $0x7a] sm:$0x1]
        %vm946 = vcmp.eq.s32.totalorder %v212, 122
        %947 = vset.pattern.permute.xlu0 0
        %948 = vperm.xlu0 %947, %v945
        %v949 = vpop.permute.xlu0 %948
        %v950 = vsel %vm946, %v949, %v944
        %v951 = vld [vmem:[%s180 + $0x7b] sm:$0x1]
        %vm952 = vcmp.eq.s32.totalorder %v212, 123
        %953 = vset.pattern.permute.xlu0 0
        %954 = vperm.xlu0 %953, %v951
        %v955 = vpop.permute.xlu0 %954
        %v956 = vsel %vm952, %v955, %v950
        %v957 = vld [vmem:[%s180 + $0x7c] sm:$0x1]
        %vm958 = vcmp.eq.s32.totalorder %v212, 124
        %959 = vset.pattern.permute.xlu0 0
        %960 = vperm.xlu0 %959, %v957
        %v961 = vpop.permute.xlu0 %960
        %v962 = vsel %vm958, %v961, %v956
        %v963 = vld [vmem:[%s180 + $0x7d] sm:$0x1]
        %vm964 = vcmp.eq.s32.totalorder %v212, 125
        %965 = vset.pattern.permute.xlu0 0
        %966 = vperm.xlu0 %965, %v963
        %v967 = vpop.permute.xlu0 %966
        %v968 = vsel %vm964, %v967, %v962
        %v969 = vld [vmem:[%s180 + $0x7e] sm:$0x1]
        %vm970 = vcmp.eq.s32.totalorder %v212, 126
        %971 = vset.pattern.permute.xlu0 0
        %972 = vperm.xlu0 %971, %v969
        %v973 = vpop.permute.xlu0 %972
        %v974 = vsel %vm970, %v973, %v968
        %v975 = vld [vmem:[%s180 + $0x7f] sm:$0x1]
        %vm976 = vcmp.eq.s32.totalorder %v212, 127
        %977 = vset.pattern.permute.xlu0 0
        %978 = vperm.xlu0 %977, %v975
        %v979 = vpop.permute.xlu0 %978
        %v980 = vsel %vm976, %v979, %v974
        %981 = vst [vmem:[%s211] sm:$0x1] %v980
        %s982 = sand.u32 %s98, 1
        %s983 = scalar_lea.sflag [#allocation4], %s982
        %s984 = sand.u32 %s98, 1
        %s985 = scalar_lea.vmem [#allocation7], %s984
        // Predicated region
        $region37: #{tpu_custom_call.1} parent=27 // pred_check
          %p986 = pneg %p108
        $region38: #{tpu_custom_call.1} parent=27 // pred_check_branch
          %988 = sbr.rel (%p986) target = $region40
        $region39: #{tpu_custom_call.1} parent=27 // pred_region
          %s990 = ssub.s32 16, 16
          %991 = vsyncadd %s983, %s990
          %s992 = sadd.s32 %s27, %s26
          %s993 = smul.addr %s992, 16
          %s994 = scalar_lea.hbm %s2, %s993
          %s996 = sshll.u32 %s985, 4
          %s997 = int_to_ptr.vmem [resolvable:$true] %s996
          %999 = dma.vmem_to_hbm [thread:$0]  %s997, 16, %s994, %s983
        $region40: #{tpu_custom_call.1} parent=27 // pred_fallthru
          _
      $region28: #{tpu_custom_call.1} parent=5 // pred_fallthru
        _
      %p1000 = scmp.le.s32.totalorder 2, %s17
      // Predicated region
      $region41: #{tpu_custom_call.1} parent=5 // pred_check
        %p1001 = pneg %p1000
      $region42: #{tpu_custom_call.1} parent=5 // pred_check_branch
        %1003 = sbr.rel (%p1001) target = $region44
      $region43: #{tpu_custom_call.1} parent=5 // pred_region
        %s1004 = ssub.s32 %s17, 2
        // Predicated region
        $region45: #{tpu_custom_call.1} parent=43 // pred_check
          %p1005 = pneg %p114
        $region46: #{tpu_custom_call.1} parent=43 // pred_check_branch
          %1007 = sbr.rel (%p1005) target = $region48
        $region47: #{tpu_custom_call.1} parent=43 // pred_region
          %s1008 = sand.u32 %s99, 1
          %s1009 = scalar_lea.sflag [#allocation4], %s1008
          %s1010 = sand.u32 %s99, 1
          %s1011 = scalar_lea.vmem [#allocation7], %s1010
          %1012 = dma.done %s1009, 16
        $region48: #{tpu_custom_call.1} parent=43 // pred_fallthru
          _
      $region44: #{tpu_custom_call.1} parent=5 // pred_fallthru
        _
    $region6: #{tpu_custom_call.1} parent=1 // loop_footer
      %s21 = sadd.s32 1, %s17
    $region7: #{tpu_custom_call.1} parent=1 // loop_footer_branch
      %16 = sbr.rel target = $region3
    $region8: #{tpu_custom_call.1} parent=1 // loop_exit
      _
    %1013 = vsyncpa [#allocation3], 1
    %s1014 = scalar_lea.sflag [#allocation3], 1
    %1015 = vsyncpa %s1014, 1
    %1016 = vsyncpa [#allocation6], 1
    %s1017 = scalar_lea.sflag [#allocation6], 1
    %1018 = vsyncpa %s1017, 1
    %1019 = vsyncpa [#allocation4], 1
    %s1020 = scalar_lea.sflag [#allocation4], 1
    %1021 = vsyncpa %s1020, 1

</llo_original>
